<compile_context>
chip_gen: v7x
topology: tpu7x:2x2x1
jax: 0.10.0
libtpu: 0.0.40
codegen_flags: <defaults>
</compile_context>

<pallas_src>
import functools

import jax
import jax.numpy as jnp
from jax.experimental import pallas as pl
from jax.experimental.pallas import tpu as pltpu

KSIZE = 7
PAD = 3


def _sam_kernel(w_ref, b_ref, mask_ref, x_ref, o_ref, sum_ref, max_ref, *, W):
    """Grid = (N // Nb, C // Ct).

    w_ref   : SMEM (98,) f32    conv weights [avg * 1/C | max], flat ky*7+kx.
    b_ref   : SMEM (1,)  f32    conv bias.
    mask_ref: VMEM (7, HW) f32  column-validity masks, one row per dx.
    x_ref   : VMEM (Nb, Ct, HW) input block (lane-dense, input dtype).
    o_ref   : VMEM (Nb, HW)     sigmoid(conv) output block (input dtype).
    sum_ref : VMEM (Nb, HW) f32 running channel sum (scratch).
    max_ref : VMEM (Nb, HW) f32 running channel max (scratch).
    """
    c = pl.program_id(1)
    c_last = pl.num_programs(1) - 1
    f32 = jnp.float32
    Nb, Ct, HW = x_ref.shape

    # ---- channel reduction: chunked ref loads, never a full-block f32 copy ----
    target = max(1, (32 * 1024) // (Nb * HW))          # ~32K elements per chunk
    ch_sz = 1
    for d in range(1, Ct + 1):
        if Ct % d == 0 and d <= target:
            ch_sz = d

    chunk = x_ref[:, 0:ch_sz, :]                       # (Nb, ch_sz, HW)
    s = jnp.sum(chunk.astype(f32), axis=1)             # (Nb, HW) f32
    m = jnp.max(chunk, axis=1)
    for c0 in range(ch_sz, Ct, ch_sz):
        chunk = x_ref[:, c0:c0 + ch_sz, :]
        s = s + jnp.sum(chunk.astype(f32), axis=1)
        m = jnp.maximum(m, jnp.max(chunk, axis=1))
    m = m.astype(f32)

    @pl.when(c == 0)
    def _init():
        sum_ref[...] = s
        max_ref[...] = m

    @pl.when(c > 0)
    def _accumulate():
        sum_ref[...] = sum_ref[...] + s
        max_ref[...] = jnp.maximum(max_ref[...], m)

    # ---- finalize: 7x7 conv in flat (lane-dense) space + sigmoid ----
    @pl.when(c == c_last)
    def _finalize():
        pad_len = PAD * W + PAD                        # 3*W + 3 zero lanes
        zpad = jnp.zeros((Nb, pad_len), f32)

        def conv_map(flat_map, w_base):
            # flat_map: (Nb, HW) f32 -> (Nb, HW) f32 partial logits.
            p = jnp.concatenate([zpad, flat_map, zpad], axis=1)   # (Nb, HW+6W+6)
            acc = None
            # dx-outer / dy-inner: one lane-shifted tap live at a time; the
            # column mask (shared by all dy of a given dx) is applied once.
            for dx in range(KSIZE):
                even = None
                odd = None
                for dy in range(KSIZE):
                    off = dy * W + dx
                    tap = p[:, off:off + HW]
                    term = w_ref[w_base + dy * KSIZE + dx] * tap
                    if dy % 2 == 0:
                        even = term if even is None else even + term
                    else:
                        odd = term if odd is None else odd + term
                part = mask_ref[dx:dx + 1, :] * (even + odd)
                acc = part if acc is None else acc + part
            return acc

        logits = conv_map(sum_ref[...], 0)             # 1/C folded into weights
        logits = logits + conv_map(max_ref[...], KSIZE * KSIZE)
        logits = logits + b_ref[0]
        o_ref[...] = jax.nn.sigmoid(logits).astype(o_ref.dtype)


def _round_up(v, m):
    return (v + m - 1) // m * m


def _sublane_granule(itemsize):
    # Second-minor tiling granule: 8 for 32-bit, 16 for 16-bit, 32 for 8-bit.
    return 8 * max(1, 4 // itemsize)


def _block_vmem_bytes(nb, ct, hw, itemsize):
    """Real (layout-padded) VMEM footprint of a (nb, ct, hw) block."""
    return nb * _round_up(ct, _sublane_granule(itemsize)) * _round_up(hw, 128) * itemsize


def _pick_tiles(N, C, HW, itemsize, budget_bytes):
    """Pick (Nb, Ct) tile sizes honoring BlockSpec tiling rules and a VMEM budget."""
    gr = _sublane_granule(itemsize)
    # Output block is (Nb, HW): Nb must be a multiple of 8 or equal N.
    nb_cands = [d for d in range(1, N + 1) if N % d == 0 and (d == N or d % 8 == 0)]
    # Input block tail is (Ct, HW): Ct must be a multiple of the granule or equal C.
    ct_cands = [d for d in range(1, C + 1) if C % d == 0 and (d == C or d % gr == 0)]
    best = None
    for nb in nb_cands:
        for ct in ct_cands:
            bb = _block_vmem_bytes(nb, ct, HW, itemsize)
            if bb <= budget_bytes:
                key = (bb, ct)                    # biggest block, prefer larger Ct
                if best is None or key > best[0]:
                    best = (key, nb, ct)
    if best is not None:
        return best[1], best[2]
    return min(nb_cands), min(ct_cands)           # fallback: smallest legal tiles


def spatial_attention(x, weight, bias, *, block_budget_bytes=8 << 20):
    """x: (N, C, H, W); weight: (1, 2, 7, 7); bias: (1,) -> (N, 1, H, W) in x.dtype."""
    N, C, H, W = x.shape
    HW = H * W
    itemsize = x.dtype.itemsize

    # Fold the 1/C of the channel mean into the avg-channel conv weights.
    w2 = weight.astype(jnp.float32).reshape(2, KSIZE * KSIZE)
    w2 = w2 * jnp.array([[1.0 / C], [1.0]], dtype=jnp.float32)
    w_flat = w2.reshape(2 * KSIZE * KSIZE)
    b = bias.astype(jnp.float32).reshape(1)

    # Column-validity masks for the flat 7x7 conv: row dx is 1 where the tap
    # column (w + dx - 3) stays inside [0, W) for the output lane's w = i % W.
    w_idx = jnp.arange(HW, dtype=jnp.int32) % W
    col = w_idx[None, :] + jnp.arange(KSIZE, dtype=jnp.int32)[:, None] - PAD
    col_masks = ((col >= 0) & (col < W)).astype(jnp.float32)          # (7, HW)

    x_flat = x.reshape(N, C, HW)                 # row-major collapse: free

    nb, ct = _pick_tiles(N, C, HW, itemsize, block_budget_bytes)
    grid = (N // nb, C // ct)

    # Explicit VMEM budget: double-buffered input + scratch + output + finalize slack.
    hw_pad = _round_up(HW, 128)
    nb_pad = _round_up(nb, 8)
    plane_f32 = nb_pad * _round_up(HW + 2 * (PAD * W + PAD), 128) * 4
    block_bytes = _block_vmem_bytes(nb, ct, HW, itemsize)
    aux_bytes = (2 * nb_pad * hw_pad * 4            # sum/max scratch
                 + 2 * nb_pad * hw_pad * itemsize   # double-buffered output
                 + 2 * 8 * hw_pad * 4               # column masks
                 + 8 * plane_f32)                   # finalize temporaries / spill
    vmem_limit = max(32 << 20, 2 * block_bytes + aux_bytes + (2 << 20))

    out_flat = pl.pallas_call(
        functools.partial(_sam_kernel, W=W),
        out_shape=jax.ShapeDtypeStruct((N, HW), x.dtype),
        grid=grid,
        in_specs=[
            pl.BlockSpec(memory_space=pltpu.MemorySpace.SMEM),      # conv weights
            pl.BlockSpec(memory_space=pltpu.MemorySpace.SMEM),      # conv bias
            pl.BlockSpec((KSIZE, HW), lambda n, c: (0, 0)),         # column masks
            pl.BlockSpec((nb, ct, HW), lambda n, c: (n, c, 0)),     # input block
        ],
        out_specs=pl.BlockSpec((nb, HW), lambda n, c: (n, 0)),
        scratch_shapes=[
            pltpu.VMEM((nb, HW), jnp.float32),   # running channel sum
            pltpu.VMEM((nb, HW), jnp.float32),   # running channel max
        ],
        compiler_params=pltpu.CompilerParams(
            dimension_semantics=("parallel", "arbitrary"),
            vmem_limit_bytes=int(vmem_limit)),
    )(w_flat, b, col_masks, x_flat)

    return out_flat.reshape(N, 1, H, W)


def _reference(x, weight, bias):
    """Pure-JAX reference matching the PyTorch forward."""
    avg = jnp.mean(x.astype(jnp.float32), axis=1, keepdims=True)
    mx = jnp.max(x, axis=1, keepdims=True).astype(jnp.float32)
    cat = jnp.concatenate([avg, mx], axis=1)             # (N,2,H,W)
    y = jax.lax.conv_general_dilated(
        cat, weight.astype(jnp.float32), window_strides=(1, 1),
        padding=[(PAD, PAD), (PAD, PAD)],
        dimension_numbers=("NCHW", "OIHW", "NCHW"))
    return jax.nn.sigmoid(y + bias.astype(jnp.float32).reshape(1, 1, 1, 1))


if __name__ == "__main__":
    key = jax.random.PRNGKey(0)
    kx, kw, kb = jax.random.split(key, 3)

    N, C, H, W = 2, 4, 16, 16
    x = jax.random.normal(kx, (N, C, H, W), dtype=jnp.float32)

    # Deterministic conv params (Conv2d(2, 1, kernel_size=7)): uniform in
    # +/- 1/sqrt(fan_in), fan_in = 2*7*7 (PyTorch default init scheme).
    fan_in = 2 * KSIZE * KSIZE
    bound = 1.0 / jnp.sqrt(jnp.float32(fan_in))
    weight = jax.random.uniform(kw, (1, 2, KSIZE, KSIZE),
                                minval=-bound, maxval=bound, dtype=jnp.float32)
    bias = jax.random.uniform(kb, (1,), minval=-bound, maxval=bound,
                              dtype=jnp.float32)

    out = spatial_attention(x, weight, bias)
    jax.block_until_ready(out)

    ref = _reference(x, weight, bias)
    assert out.shape == (N, 1, H, W)
    assert out.dtype == x.dtype
    assert jnp.allclose(out, ref.astype(out.dtype), atol=1e-5, rtol=1e-5)

    print("KERNEL_OK")
</pallas_src>

<mosaic_0001>
module attributes {stable_mosaic.version = 11 : i64} {
  func.func @_sam_kernel(%arg0: i32, %arg1: i32, %arg2: memref<98xf32, #tpu.memory_space<smem>>, %arg3: memref<1xf32, #tpu.memory_space<smem>>, %arg4: memref<7x256xf32, #tpu.memory_space<vmem>>, %arg5: memref<2x4x256xf32, #tpu.memory_space<vmem>>, %arg6: memref<2x256xf32, #tpu.memory_space<vmem>>, %arg7: memref<2x256xf32, #tpu.memory_space<vmem>>, %arg8: memref<2x256xf32, #tpu.memory_space<vmem>>) attributes {dimension_semantics = [#tpu.dimension_semantics<parallel>, #tpu.dimension_semantics<arbitrary>], iteration_bounds = array<i64: 1, 1>, scalar_prefetch = 0 : i64, scratch_operands = 2 : i64, tpu.core_type = #tpu.core_type<tc>, window_params = [{transform_indices = @transform_0, window_bounds = array<i64: 98>}, {transform_indices = @transform_1, window_bounds = array<i64: 1>}, {pipeline_mode = #tpu.pipeline_mode<synchronous>, transform_indices = @transform_2, window_bounds = array<i64: 7, 256>}, {transform_indices = @transform_3, window_bounds = array<i64: 2, 4, 256>}, {transform_indices = @transform_4, window_bounds = array<i64: 2, 256>}]} {
    %c0 = arith.constant 0 : index
    %c0_0 = arith.constant 0 : index
    %c0_1 = arith.constant 0 : index
    %0 = vector.load %arg5[%c0, %c0_0, %c0_1] : memref<2x4x256xf32, #tpu.memory_space<vmem>>, vector<2x4x256xf32>
    %cst = arith.constant dense<0.000000e+00> : vector<2x256xf32>
    %1 = vector.multi_reduction <add>, %0, %cst [1] : vector<2x4x256xf32> to vector<2x256xf32>
    %cst_2 = arith.constant dense<0xFF800000> : vector<2x256xf32>
    %2 = vector.multi_reduction <maximumf>, %0, %cst_2 [1] : vector<2x4x256xf32> to vector<2x256xf32>
    %c0_i32 = arith.constant 0 : i32
    %3 = arith.cmpi eq, %arg1, %c0_i32 : i32
    %4 = arith.extui %3 : i1 to i32
    %c0_i32_3 = arith.constant 0 : i32
    %5 = arith.cmpi ne, %4, %c0_i32_3 : i32
    scf.if %5 {
      %c0_8 = arith.constant 0 : index
      %c0_9 = arith.constant 0 : index
      %12 = vector.load %arg7[%c0_8, %c0_9] : memref<2x256xf32, #tpu.memory_space<vmem>>, vector<2x256xf32>
      tpu.vector_store %arg7[%c0_8, %c0_9], %1 {strides = array<i32>} : memref<2x256xf32, #tpu.memory_space<vmem>>, vector<2x256xf32>,
      %c0_10 = arith.constant 0 : index
      %c0_11 = arith.constant 0 : index
      %13 = vector.load %arg8[%c0_10, %c0_11] : memref<2x256xf32, #tpu.memory_space<vmem>>, vector<2x256xf32>
      tpu.vector_store %arg8[%c0_10, %c0_11], %2 {strides = array<i32>} : memref<2x256xf32, #tpu.memory_space<vmem>>, vector<2x256xf32>,
    } else {
    }
    %c0_i32_4 = arith.constant 0 : i32
    %6 = arith.cmpi sgt, %arg1, %c0_i32_4 : i32
    %7 = arith.extui %6 : i1 to i32
    %c0_i32_5 = arith.constant 0 : i32
    %8 = arith.cmpi ne, %7, %c0_i32_5 : i32
    scf.if %8 {
      %c0_8 = arith.constant 0 : index
      %c0_9 = arith.constant 0 : index
      %12 = vector.load %arg7[%c0_8, %c0_9] : memref<2x256xf32, #tpu.memory_space<vmem>>, vector<2x256xf32>
      %13 = arith.addf %12, %1 : vector<2x256xf32>
      %c0_10 = arith.constant 0 : index
      %c0_11 = arith.constant 0 : index
      %14 = vector.load %arg7[%c0_10, %c0_11] : memref<2x256xf32, #tpu.memory_space<vmem>>, vector<2x256xf32>
      tpu.vector_store %arg7[%c0_10, %c0_11], %13 {strides = array<i32>} : memref<2x256xf32, #tpu.memory_space<vmem>>, vector<2x256xf32>,
      %c0_12 = arith.constant 0 : index
      %c0_13 = arith.constant 0 : index
      %15 = vector.load %arg8[%c0_12, %c0_13] : memref<2x256xf32, #tpu.memory_space<vmem>>, vector<2x256xf32>
      %16 = arith.maximumf %15, %2 : vector<2x256xf32>
      %c0_14 = arith.constant 0 : index
      %c0_15 = arith.constant 0 : index
      %17 = vector.load %arg8[%c0_14, %c0_15] : memref<2x256xf32, #tpu.memory_space<vmem>>, vector<2x256xf32>
      tpu.vector_store %arg8[%c0_14, %c0_15], %16 {strides = array<i32>} : memref<2x256xf32, #tpu.memory_space<vmem>>, vector<2x256xf32>,
    } else {
    }
    %c0_i32_6 = arith.constant 0 : i32
    %9 = arith.cmpi eq, %arg1, %c0_i32_6 : i32
    %10 = arith.extui %9 : i1 to i32
    %c0_i32_7 = arith.constant 0 : i32
    %11 = arith.cmpi ne, %10, %c0_i32_7 : i32
    scf.if %11 {
      %cst_8 = arith.constant 0.000000e+00 : f32
      %12 = vector.broadcast %cst_8 : f32 to vector<2x51xf32>
      %c0_9 = arith.constant 0 : index
      %c0_10 = arith.constant 0 : index
      %13 = vector.load %arg7[%c0_9, %c0_10] : memref<2x256xf32, #tpu.memory_space<vmem>>, vector<2x256xf32>
      %14 = tpu.concatenate %12, %13, %12 in 1 : vector<2x51xf32>, vector<2x256xf32>, vector<2x51xf32> -> vector<2x358xf32>
      %15 = vector.extract_strided_slice %14 {offsets = [0, 0], sizes = [2, 256], strides = [1, 1]} : vector<2x358xf32> to vector<2x256xf32>
      %c0_11 = arith.constant 0 : index
      %16 = memref.load %arg2[%c0_11] : memref<98xf32, #tpu.memory_space<smem>>
      %17 = vector.broadcast %16 : f32 to vector<2x256xf32>
      %18 = arith.mulf %17, %15 : vector<2x256xf32>
      %19 = vector.extract_strided_slice %14 {offsets = [0, 16], sizes = [2, 256], strides = [1, 1]} : vector<2x358xf32> to vector<2x256xf32>
      %c7 = arith.constant 7 : index
      %20 = memref.load %arg2[%c7] : memref<98xf32, #tpu.memory_space<smem>>
      %21 = vector.broadcast %20 : f32 to vector<2x256xf32>
      %22 = arith.mulf %21, %19 : vector<2x256xf32>
      %23 = vector.extract_strided_slice %14 {offsets = [0, 32], sizes = [2, 256], strides = [1, 1]} : vector<2x358xf32> to vector<2x256xf32>
      %c14 = arith.constant 14 : index
      %24 = memref.load %arg2[%c14] : memref<98xf32, #tpu.memory_space<smem>>
      %25 = vector.broadcast %24 : f32 to vector<2x256xf32>
      %26 = arith.mulf %25, %23 : vector<2x256xf32>
      %27 = arith.addf %18, %26 : vector<2x256xf32>
      %28 = vector.extract_strided_slice %14 {offsets = [0, 48], sizes = [2, 256], strides = [1, 1]} : vector<2x358xf32> to vector<2x256xf32>
      %c21 = arith.constant 21 : index
      %29 = memref.load %arg2[%c21] : memref<98xf32, #tpu.memory_space<smem>>
      %30 = vector.broadcast %29 : f32 to vector<2x256xf32>
      %31 = arith.mulf %30, %28 : vector<2x256xf32>
      %32 = arith.addf %22, %31 : vector<2x256xf32>
      %33 = vector.extract_strided_slice %14 {offsets = [0, 64], sizes = [2, 256], strides = [1, 1]} : vector<2x358xf32> to vector<2x256xf32>
      %c28 = arith.constant 28 : index
      %34 = memref.load %arg2[%c28] : memref<98xf32, #tpu.memory_space<smem>>
      %35 = vector.broadcast %34 : f32 to vector<2x256xf32>
      %36 = arith.mulf %35, %33 : vector<2x256xf32>
      %37 = arith.addf %27, %36 : vector<2x256xf32>
      %38 = vector.extract_strided_slice %14 {offsets = [0, 80], sizes = [2, 256], strides = [1, 1]} : vector<2x358xf32> to vector<2x256xf32>
      %c35 = arith.constant 35 : index
      %39 = memref.load %arg2[%c35] : memref<98xf32, #tpu.memory_space<smem>>
      %40 = vector.broadcast %39 : f32 to vector<2x256xf32>
      %41 = arith.mulf %40, %38 : vector<2x256xf32>
      %42 = arith.addf %32, %41 : vector<2x256xf32>
      %43 = vector.extract_strided_slice %14 {offsets = [0, 96], sizes = [2, 256], strides = [1, 1]} : vector<2x358xf32> to vector<2x256xf32>
      %c42 = arith.constant 42 : index
      %44 = memref.load %arg2[%c42] : memref<98xf32, #tpu.memory_space<smem>>
      %45 = vector.broadcast %44 : f32 to vector<2x256xf32>
      %46 = arith.mulf %45, %43 : vector<2x256xf32>
      %47 = arith.addf %37, %46 : vector<2x256xf32>
      %c0_12 = arith.constant 0 : index
      %c0_13 = arith.constant 0 : index
      %48 = vector.load %arg4[%c0_12, %c0_13] : memref<7x256xf32, #tpu.memory_space<vmem>>, vector<1x256xf32>
      %49 = arith.addf %47, %42 : vector<2x256xf32>
      %50 = vector.broadcast %48 : vector<1x256xf32> to vector<2x256xf32>
      %51 = arith.mulf %50, %49 : vector<2x256xf32>
      %52 = vector.extract_strided_slice %14 {offsets = [0, 1], sizes = [2, 256], strides = [1, 1]} : vector<2x358xf32> to vector<2x256xf32>
      %c1 = arith.constant 1 : index
      %53 = memref.load %arg2[%c1] : memref<98xf32, #tpu.memory_space<smem>>
      %54 = vector.broadcast %53 : f32 to vector<2x256xf32>
      %55 = arith.mulf %54, %52 : vector<2x256xf32>
      %56 = vector.extract_strided_slice %14 {offsets = [0, 17], sizes = [2, 256], strides = [1, 1]} : vector<2x358xf32> to vector<2x256xf32>
      %c8 = arith.constant 8 : index
      %57 = memref.load %arg2[%c8] : memref<98xf32, #tpu.memory_space<smem>>
      %58 = vector.broadcast %57 : f32 to vector<2x256xf32>
      %59 = arith.mulf %58, %56 : vector<2x256xf32>
      %60 = vector.extract_strided_slice %14 {offsets = [0, 33], sizes = [2, 256], strides = [1, 1]} : vector<2x358xf32> to vector<2x256xf32>
      %c15 = arith.constant 15 : index
      %61 = memref.load %arg2[%c15] : memref<98xf32, #tpu.memory_space<smem>>
      %62 = vector.broadcast %61 : f32 to vector<2x256xf32>
      %63 = arith.mulf %62, %60 : vector<2x256xf32>
      %64 = arith.addf %55, %63 : vector<2x256xf32>
      %65 = vector.extract_strided_slice %14 {offsets = [0, 49], sizes = [2, 256], strides = [1, 1]} : vector<2x358xf32> to vector<2x256xf32>
      %c22 = arith.constant 22 : index
      %66 = memref.load %arg2[%c22] : memref<98xf32, #tpu.memory_space<smem>>
      %67 = vector.broadcast %66 : f32 to vector<2x256xf32>
      %68 = arith.mulf %67, %65 : vector<2x256xf32>
      %69 = arith.addf %59, %68 : vector<2x256xf32>
      %70 = vector.extract_strided_slice %14 {offsets = [0, 65], sizes = [2, 256], strides = [1, 1]} : vector<2x358xf32> to vector<2x256xf32>
      %c29 = arith.constant 29 : index
      %71 = memref.load %arg2[%c29] : memref<98xf32, #tpu.memory_space<smem>>
      %72 = vector.broadcast %71 : f32 to vector<2x256xf32>
      %73 = arith.mulf %72, %70 : vector<2x256xf32>
      %74 = arith.addf %64, %73 : vector<2x256xf32>
      %75 = vector.extract_strided_slice %14 {offsets = [0, 81], sizes = [2, 256], strides = [1, 1]} : vector<2x358xf32> to vector<2x256xf32>
      %c36 = arith.constant 36 : index
      %76 = memref.load %arg2[%c36] : memref<98xf32, #tpu.memory_space<smem>>
      %77 = vector.broadcast %76 : f32 to vector<2x256xf32>
      %78 = arith.mulf %77, %75 : vector<2x256xf32>
      %79 = arith.addf %69, %78 : vector<2x256xf32>
      %80 = vector.extract_strided_slice %14 {offsets = [0, 97], sizes = [2, 256], strides = [1, 1]} : vector<2x358xf32> to vector<2x256xf32>
      %c43 = arith.constant 43 : index
      %81 = memref.load %arg2[%c43] : memref<98xf32, #tpu.memory_space<smem>>
      %82 = vector.broadcast %81 : f32 to vector<2x256xf32>
      %83 = arith.mulf %82, %80 : vector<2x256xf32>
      %84 = arith.addf %74, %83 : vector<2x256xf32>
      %c1_14 = arith.constant 1 : index
      %c0_15 = arith.constant 0 : index
      %85 = vector.load %arg4[%c1_14, %c0_15] : memref<7x256xf32, #tpu.memory_space<vmem>>, vector<1x256xf32>
      %86 = arith.addf %84, %79 : vector<2x256xf32>
      %87 = vector.broadcast %85 : vector<1x256xf32> to vector<2x256xf32>
      %88 = arith.mulf %87, %86 : vector<2x256xf32>
      %89 = arith.addf %51, %88 : vector<2x256xf32>
      %90 = vector.extract_strided_slice %14 {offsets = [0, 2], sizes = [2, 256], strides = [1, 1]} : vector<2x358xf32> to vector<2x256xf32>
      %c2 = arith.constant 2 : index
      %91 = memref.load %arg2[%c2] : memref<98xf32, #tpu.memory_space<smem>>
      %92 = vector.broadcast %91 : f32 to vector<2x256xf32>
      %93 = arith.mulf %92, %90 : vector<2x256xf32>
      %94 = vector.extract_strided_slice %14 {offsets = [0, 18], sizes = [2, 256], strides = [1, 1]} : vector<2x358xf32> to vector<2x256xf32>
      %c9 = arith.constant 9 : index
      %95 = memref.load %arg2[%c9] : memref<98xf32, #tpu.memory_space<smem>>
      %96 = vector.broadcast %95 : f32 to vector<2x256xf32>
      %97 = arith.mulf %96, %94 : vector<2x256xf32>
      %98 = vector.extract_strided_slice %14 {offsets = [0, 34], sizes = [2, 256], strides = [1, 1]} : vector<2x358xf32> to vector<2x256xf32>
      %c16 = arith.constant 16 : index
      %99 = memref.load %arg2[%c16] : memref<98xf32, #tpu.memory_space<smem>>
      %100 = vector.broadcast %99 : f32 to vector<2x256xf32>
      %101 = arith.mulf %100, %98 : vector<2x256xf32>
      %102 = arith.addf %93, %101 : vector<2x256xf32>
      %103 = vector.extract_strided_slice %14 {offsets = [0, 50], sizes = [2, 256], strides = [1, 1]} : vector<2x358xf32> to vector<2x256xf32>
      %c23 = arith.constant 23 : index
      %104 = memref.load %arg2[%c23] : memref<98xf32, #tpu.memory_space<smem>>
      %105 = vector.broadcast %104 : f32 to vector<2x256xf32>
      %106 = arith.mulf %105, %103 : vector<2x256xf32>
      %107 = arith.addf %97, %106 : vector<2x256xf32>
      %108 = vector.extract_strided_slice %14 {offsets = [0, 66], sizes = [2, 256], strides = [1, 1]} : vector<2x358xf32> to vector<2x256xf32>
      %c30 = arith.constant 30 : index
      %109 = memref.load %arg2[%c30] : memref<98xf32, #tpu.memory_space<smem>>
      %110 = vector.broadcast %109 : f32 to vector<2x256xf32>
      %111 = arith.mulf %110, %108 : vector<2x256xf32>
      %112 = arith.addf %102, %111 : vector<2x256xf32>
      %113 = vector.extract_strided_slice %14 {offsets = [0, 82], sizes = [2, 256], strides = [1, 1]} : vector<2x358xf32> to vector<2x256xf32>
      %c37 = arith.constant 37 : index
      %114 = memref.load %arg2[%c37] : memref<98xf32, #tpu.memory_space<smem>>
      %115 = vector.broadcast %114 : f32 to vector<2x256xf32>
      %116 = arith.mulf %115, %113 : vector<2x256xf32>
      %117 = arith.addf %107, %116 : vector<2x256xf32>
      %118 = vector.extract_strided_slice %14 {offsets = [0, 98], sizes = [2, 256], strides = [1, 1]} : vector<2x358xf32> to vector<2x256xf32>
      %c44 = arith.constant 44 : index
      %119 = memref.load %arg2[%c44] : memref<98xf32, #tpu.memory_space<smem>>
      %120 = vector.broadcast %119 : f32 to vector<2x256xf32>
      %121 = arith.mulf %120, %118 : vector<2x256xf32>
      %122 = arith.addf %112, %121 : vector<2x256xf32>
      %c2_16 = arith.constant 2 : index
      %c0_17 = arith.constant 0 : index
      %123 = vector.load %arg4[%c2_16, %c0_17] : memref<7x256xf32, #tpu.memory_space<vmem>>, vector<1x256xf32>
      %124 = arith.addf %122, %117 : vector<2x256xf32>
      %125 = vector.broadcast %123 : vector<1x256xf32> to vector<2x256xf32>
      %126 = arith.mulf %125, %124 : vector<2x256xf32>
      %127 = arith.addf %89, %126 : vector<2x256xf32>
      %128 = vector.extract_strided_slice %14 {offsets = [0, 3], sizes = [2, 256], strides = [1, 1]} : vector<2x358xf32> to vector<2x256xf32>
      %c3 = arith.constant 3 : index
      %129 = memref.load %arg2[%c3] : memref<98xf32, #tpu.memory_space<smem>>
      %130 = vector.broadcast %129 : f32 to vector<2x256xf32>
      %131 = arith.mulf %130, %128 : vector<2x256xf32>
      %132 = vector.extract_strided_slice %14 {offsets = [0, 19], sizes = [2, 256], strides = [1, 1]} : vector<2x358xf32> to vector<2x256xf32>
      %c10 = arith.constant 10 : index
      %133 = memref.load %arg2[%c10] : memref<98xf32, #tpu.memory_space<smem>>
      %134 = vector.broadcast %133 : f32 to vector<2x256xf32>
      %135 = arith.mulf %134, %132 : vector<2x256xf32>
      %136 = vector.extract_strided_slice %14 {offsets = [0, 35], sizes = [2, 256], strides = [1, 1]} : vector<2x358xf32> to vector<2x256xf32>
      %c17 = arith.constant 17 : index
      %137 = memref.load %arg2[%c17] : memref<98xf32, #tpu.memory_space<smem>>
      %138 = vector.broadcast %137 : f32 to vector<2x256xf32>
      %139 = arith.mulf %138, %136 : vector<2x256xf32>
      %140 = arith.addf %131, %139 : vector<2x256xf32>
      %141 = vector.extract_strided_slice %14 {offsets = [0, 51], sizes = [2, 256], strides = [1, 1]} : vector<2x358xf32> to vector<2x256xf32>
      %c24 = arith.constant 24 : index
      %142 = memref.load %arg2[%c24] : memref<98xf32, #tpu.memory_space<smem>>
      %143 = vector.broadcast %142 : f32 to vector<2x256xf32>
      %144 = arith.mulf %143, %141 : vector<2x256xf32>
      %145 = arith.addf %135, %144 : vector<2x256xf32>
      %146 = vector.extract_strided_slice %14 {offsets = [0, 67], sizes = [2, 256], strides = [1, 1]} : vector<2x358xf32> to vector<2x256xf32>
      %c31 = arith.constant 31 : index
      %147 = memref.load %arg2[%c31] : memref<98xf32, #tpu.memory_space<smem>>
      %148 = vector.broadcast %147 : f32 to vector<2x256xf32>
      %149 = arith.mulf %148, %146 : vector<2x256xf32>
      %150 = arith.addf %140, %149 : vector<2x256xf32>
      %151 = vector.extract_strided_slice %14 {offsets = [0, 83], sizes = [2, 256], strides = [1, 1]} : vector<2x358xf32> to vector<2x256xf32>
      %c38 = arith.constant 38 : index
      %152 = memref.load %arg2[%c38] : memref<98xf32, #tpu.memory_space<smem>>
      %153 = vector.broadcast %152 : f32 to vector<2x256xf32>
      %154 = arith.mulf %153, %151 : vector<2x256xf32>
      %155 = arith.addf %145, %154 : vector<2x256xf32>
      %156 = vector.extract_strided_slice %14 {offsets = [0, 99], sizes = [2, 256], strides = [1, 1]} : vector<2x358xf32> to vector<2x256xf32>
      %c45 = arith.constant 45 : index
      %157 = memref.load %arg2[%c45] : memref<98xf32, #tpu.memory_space<smem>>
      %158 = vector.broadcast %157 : f32 to vector<2x256xf32>
      %159 = arith.mulf %158, %156 : vector<2x256xf32>
      %160 = arith.addf %150, %159 : vector<2x256xf32>
      %c3_18 = arith.constant 3 : index
      %c0_19 = arith.constant 0 : index
      %161 = vector.load %arg4[%c3_18, %c0_19] : memref<7x256xf32, #tpu.memory_space<vmem>>, vector<1x256xf32>
      %162 = arith.addf %160, %155 : vector<2x256xf32>
      %163 = vector.broadcast %161 : vector<1x256xf32> to vector<2x256xf32>
      %164 = arith.mulf %163, %162 : vector<2x256xf32>
      %165 = arith.addf %127, %164 : vector<2x256xf32>
      %166 = vector.extract_strided_slice %14 {offsets = [0, 4], sizes = [2, 256], strides = [1, 1]} : vector<2x358xf32> to vector<2x256xf32>
      %c4 = arith.constant 4 : index
      %167 = memref.load %arg2[%c4] : memref<98xf32, #tpu.memory_space<smem>>
      %168 = vector.broadcast %167 : f32 to vector<2x256xf32>
      %169 = arith.mulf %168, %166 : vector<2x256xf32>
      %170 = vector.extract_strided_slice %14 {offsets = [0, 20], sizes = [2, 256], strides = [1, 1]} : vector<2x358xf32> to vector<2x256xf32>
      %c11 = arith.constant 11 : index
      %171 = memref.load %arg2[%c11] : memref<98xf32, #tpu.memory_space<smem>>
      %172 = vector.broadcast %171 : f32 to vector<2x256xf32>
      %173 = arith.mulf %172, %170 : vector<2x256xf32>
      %174 = vector.extract_strided_slice %14 {offsets = [0, 36], sizes = [2, 256], strides = [1, 1]} : vector<2x358xf32> to vector<2x256xf32>
      %c18 = arith.constant 18 : index
      %175 = memref.load %arg2[%c18] : memref<98xf32, #tpu.memory_space<smem>>
      %176 = vector.broadcast %175 : f32 to vector<2x256xf32>
      %177 = arith.mulf %176, %174 : vector<2x256xf32>
      %178 = arith.addf %169, %177 : vector<2x256xf32>
      %179 = vector.extract_strided_slice %14 {offsets = [0, 52], sizes = [2, 256], strides = [1, 1]} : vector<2x358xf32> to vector<2x256xf32>
      %c25 = arith.constant 25 : index
      %180 = memref.load %arg2[%c25] : memref<98xf32, #tpu.memory_space<smem>>
      %181 = vector.broadcast %180 : f32 to vector<2x256xf32>
      %182 = arith.mulf %181, %179 : vector<2x256xf32>
      %183 = arith.addf %173, %182 : vector<2x256xf32>
      %184 = vector.extract_strided_slice %14 {offsets = [0, 68], sizes = [2, 256], strides = [1, 1]} : vector<2x358xf32> to vector<2x256xf32>
      %c32 = arith.constant 32 : index
      %185 = memref.load %arg2[%c32] : memref<98xf32, #tpu.memory_space<smem>>
      %186 = vector.broadcast %185 : f32 to vector<2x256xf32>
      %187 = arith.mulf %186, %184 : vector<2x256xf32>
      %188 = arith.addf %178, %187 : vector<2x256xf32>
      %189 = vector.extract_strided_slice %14 {offsets = [0, 84], sizes = [2, 256], strides = [1, 1]} : vector<2x358xf32> to vector<2x256xf32>
      %c39 = arith.constant 39 : index
      %190 = memref.load %arg2[%c39] : memref<98xf32, #tpu.memory_space<smem>>
      %191 = vector.broadcast %190 : f32 to vector<2x256xf32>
      %192 = arith.mulf %191, %189 : vector<2x256xf32>
      %193 = arith.addf %183, %192 : vector<2x256xf32>
      %194 = vector.extract_strided_slice %14 {offsets = [0, 100], sizes = [2, 256], strides = [1, 1]} : vector<2x358xf32> to vector<2x256xf32>
      %c46 = arith.constant 46 : index
      %195 = memref.load %arg2[%c46] : memref<98xf32, #tpu.memory_space<smem>>
      %196 = vector.broadcast %195 : f32 to vector<2x256xf32>
      %197 = arith.mulf %196, %194 : vector<2x256xf32>
      %198 = arith.addf %188, %197 : vector<2x256xf32>
      %c4_20 = arith.constant 4 : index
      %c0_21 = arith.constant 0 : index
      %199 = vector.load %arg4[%c4_20, %c0_21] : memref<7x256xf32, #tpu.memory_space<vmem>>, vector<1x256xf32>
      %200 = arith.addf %198, %193 : vector<2x256xf32>
      %201 = vector.broadcast %199 : vector<1x256xf32> to vector<2x256xf32>
      %202 = arith.mulf %201, %200 : vector<2x256xf32>
      %203 = arith.addf %165, %202 : vector<2x256xf32>
      %204 = vector.extract_strided_slice %14 {offsets = [0, 5], sizes = [2, 256], strides = [1, 1]} : vector<2x358xf32> to vector<2x256xf32>
      %c5 = arith.constant 5 : index
      %205 = memref.load %arg2[%c5] : memref<98xf32, #tpu.memory_space<smem>>
      %206 = vector.broadcast %205 : f32 to vector<2x256xf32>
      %207 = arith.mulf %206, %204 : vector<2x256xf32>
      %208 = vector.extract_strided_slice %14 {offsets = [0, 21], sizes = [2, 256], strides = [1, 1]} : vector<2x358xf32> to vector<2x256xf32>
      %c12 = arith.constant 12 : index
      %209 = memref.load %arg2[%c12] : memref<98xf32, #tpu.memory_space<smem>>
      %210 = vector.broadcast %209 : f32 to vector<2x256xf32>
      %211 = arith.mulf %210, %208 : vector<2x256xf32>
      %212 = vector.extract_strided_slice %14 {offsets = [0, 37], sizes = [2, 256], strides = [1, 1]} : vector<2x358xf32> to vector<2x256xf32>
      %c19 = arith.constant 19 : index
      %213 = memref.load %arg2[%c19] : memref<98xf32, #tpu.memory_space<smem>>
      %214 = vector.broadcast %213 : f32 to vector<2x256xf32>
      %215 = arith.mulf %214, %212 : vector<2x256xf32>
      %216 = arith.addf %207, %215 : vector<2x256xf32>
      %217 = vector.extract_strided_slice %14 {offsets = [0, 53], sizes = [2, 256], strides = [1, 1]} : vector<2x358xf32> to vector<2x256xf32>
      %c26 = arith.constant 26 : index
      %218 = memref.load %arg2[%c26] : memref<98xf32, #tpu.memory_space<smem>>
      %219 = vector.broadcast %218 : f32 to vector<2x256xf32>
      %220 = arith.mulf %219, %217 : vector<2x256xf32>
      %221 = arith.addf %211, %220 : vector<2x256xf32>
      %222 = vector.extract_strided_slice %14 {offsets = [0, 69], sizes = [2, 256], strides = [1, 1]} : vector<2x358xf32> to vector<2x256xf32>
      %c33 = arith.constant 33 : index
      %223 = memref.load %arg2[%c33] : memref<98xf32, #tpu.memory_space<smem>>
      %224 = vector.broadcast %223 : f32 to vector<2x256xf32>
      %225 = arith.mulf %224, %222 : vector<2x256xf32>
      %226 = arith.addf %216, %225 : vector<2x256xf32>
      %227 = vector.extract_strided_slice %14 {offsets = [0, 85], sizes = [2, 256], strides = [1, 1]} : vector<2x358xf32> to vector<2x256xf32>
      %c40 = arith.constant 40 : index
      %228 = memref.load %arg2[%c40] : memref<98xf32, #tpu.memory_space<smem>>
      %229 = vector.broadcast %228 : f32 to vector<2x256xf32>
      %230 = arith.mulf %229, %227 : vector<2x256xf32>
      %231 = arith.addf %221, %230 : vector<2x256xf32>
      %232 = vector.extract_strided_slice %14 {offsets = [0, 101], sizes = [2, 256], strides = [1, 1]} : vector<2x358xf32> to vector<2x256xf32>
      %c47 = arith.constant 47 : index
      %233 = memref.load %arg2[%c47] : memref<98xf32, #tpu.memory_space<smem>>
      %234 = vector.broadcast %233 : f32 to vector<2x256xf32>
      %235 = arith.mulf %234, %232 : vector<2x256xf32>
      %236 = arith.addf %226, %235 : vector<2x256xf32>
      %c5_22 = arith.constant 5 : index
      %c0_23 = arith.constant 0 : index
      %237 = vector.load %arg4[%c5_22, %c0_23] : memref<7x256xf32, #tpu.memory_space<vmem>>, vector<1x256xf32>
      %238 = arith.addf %236, %231 : vector<2x256xf32>
      %239 = vector.broadcast %237 : vector<1x256xf32> to vector<2x256xf32>
      %240 = arith.mulf %239, %238 : vector<2x256xf32>
      %241 = arith.addf %203, %240 : vector<2x256xf32>
      %242 = vector.extract_strided_slice %14 {offsets = [0, 6], sizes = [2, 256], strides = [1, 1]} : vector<2x358xf32> to vector<2x256xf32>
      %c6 = arith.constant 6 : index
      %243 = memref.load %arg2[%c6] : memref<98xf32, #tpu.memory_space<smem>>
      %244 = vector.broadcast %243 : f32 to vector<2x256xf32>
      %245 = arith.mulf %244, %242 : vector<2x256xf32>
      %246 = vector.extract_strided_slice %14 {offsets = [0, 22], sizes = [2, 256], strides = [1, 1]} : vector<2x358xf32> to vector<2x256xf32>
      %c13 = arith.constant 13 : index
      %247 = memref.load %arg2[%c13] : memref<98xf32, #tpu.memory_space<smem>>
      %248 = vector.broadcast %247 : f32 to vector<2x256xf32>
      %249 = arith.mulf %248, %246 : vector<2x256xf32>
      %250 = vector.extract_strided_slice %14 {offsets = [0, 38], sizes = [2, 256], strides = [1, 1]} : vector<2x358xf32> to vector<2x256xf32>
      %c20 = arith.constant 20 : index
      %251 = memref.load %arg2[%c20] : memref<98xf32, #tpu.memory_space<smem>>
      %252 = vector.broadcast %251 : f32 to vector<2x256xf32>
      %253 = arith.mulf %252, %250 : vector<2x256xf32>
      %254 = arith.addf %245, %253 : vector<2x256xf32>
      %255 = vector.extract_strided_slice %14 {offsets = [0, 54], sizes = [2, 256], strides = [1, 1]} : vector<2x358xf32> to vector<2x256xf32>
      %c27 = arith.constant 27 : index
      %256 = memref.load %arg2[%c27] : memref<98xf32, #tpu.memory_space<smem>>
      %257 = vector.broadcast %256 : f32 to vector<2x256xf32>
      %258 = arith.mulf %257, %255 : vector<2x256xf32>
      %259 = arith.addf %249, %258 : vector<2x256xf32>
      %260 = vector.extract_strided_slice %14 {offsets = [0, 70], sizes = [2, 256], strides = [1, 1]} : vector<2x358xf32> to vector<2x256xf32>
      %c34 = arith.constant 34 : index
      %261 = memref.load %arg2[%c34] : memref<98xf32, #tpu.memory_space<smem>>
      %262 = vector.broadcast %261 : f32 to vector<2x256xf32>
      %263 = arith.mulf %262, %260 : vector<2x256xf32>
      %264 = arith.addf %254, %263 : vector<2x256xf32>
      %265 = vector.extract_strided_slice %14 {offsets = [0, 86], sizes = [2, 256], strides = [1, 1]} : vector<2x358xf32> to vector<2x256xf32>
      %c41 = arith.constant 41 : index
      %266 = memref.load %arg2[%c41] : memref<98xf32, #tpu.memory_space<smem>>
      %267 = vector.broadcast %266 : f32 to vector<2x256xf32>
      %268 = arith.mulf %267, %265 : vector<2x256xf32>
      %269 = arith.addf %259, %268 : vector<2x256xf32>
      %270 = vector.extract_strided_slice %14 {offsets = [0, 102], sizes = [2, 256], strides = [1, 1]} : vector<2x358xf32> to vector<2x256xf32>
      %c48 = arith.constant 48 : index
      %271 = memref.load %arg2[%c48] : memref<98xf32, #tpu.memory_space<smem>>
      %272 = vector.broadcast %271 : f32 to vector<2x256xf32>
      %273 = arith.mulf %272, %270 : vector<2x256xf32>
      %274 = arith.addf %264, %273 : vector<2x256xf32>
      %c6_24 = arith.constant 6 : index
      %c0_25 = arith.constant 0 : index
      %275 = vector.load %arg4[%c6_24, %c0_25] : memref<7x256xf32, #tpu.memory_space<vmem>>, vector<1x256xf32>
      %276 = arith.addf %274, %269 : vector<2x256xf32>
      %277 = vector.broadcast %275 : vector<1x256xf32> to vector<2x256xf32>
      %278 = arith.mulf %277, %276 : vector<2x256xf32>
      %279 = arith.addf %241, %278 : vector<2x256xf32>
      %c0_26 = arith.constant 0 : index
      %c0_27 = arith.constant 0 : index
      %280 = vector.load %arg8[%c0_26, %c0_27] : memref<2x256xf32, #tpu.memory_space<vmem>>, vector<2x256xf32>
      %281 = tpu.concatenate %12, %280, %12 in 1 : vector<2x51xf32>, vector<2x256xf32>, vector<2x51xf32> -> vector<2x358xf32>
      %282 = vector.extract_strided_slice %281 {offsets = [0, 0], sizes = [2, 256], strides = [1, 1]} : vector<2x358xf32> to vector<2x256xf32>
      %c49 = arith.constant 49 : index
      %283 = memref.load %arg2[%c49] : memref<98xf32, #tpu.memory_space<smem>>
      %284 = vector.broadcast %283 : f32 to vector<2x256xf32>
      %285 = arith.mulf %284, %282 : vector<2x256xf32>
      %286 = vector.extract_strided_slice %281 {offsets = [0, 16], sizes = [2, 256], strides = [1, 1]} : vector<2x358xf32> to vector<2x256xf32>
      %c56 = arith.constant 56 : index
      %287 = memref.load %arg2[%c56] : memref<98xf32, #tpu.memory_space<smem>>
      %288 = vector.broadcast %287 : f32 to vector<2x256xf32>
      %289 = arith.mulf %288, %286 : vector<2x256xf32>
      %290 = vector.extract_strided_slice %281 {offsets = [0, 32], sizes = [2, 256], strides = [1, 1]} : vector<2x358xf32> to vector<2x256xf32>
      %c63 = arith.constant 63 : index
      %291 = memref.load %arg2[%c63] : memref<98xf32, #tpu.memory_space<smem>>
      %292 = vector.broadcast %291 : f32 to vector<2x256xf32>
      %293 = arith.mulf %292, %290 : vector<2x256xf32>
      %294 = arith.addf %285, %293 : vector<2x256xf32>
      %295 = vector.extract_strided_slice %281 {offsets = [0, 48], sizes = [2, 256], strides = [1, 1]} : vector<2x358xf32> to vector<2x256xf32>
      %c70 = arith.constant 70 : index
      %296 = memref.load %arg2[%c70] : memref<98xf32, #tpu.memory_space<smem>>
      %297 = vector.broadcast %296 : f32 to vector<2x256xf32>
      %298 = arith.mulf %297, %295 : vector<2x256xf32>
      %299 = arith.addf %289, %298 : vector<2x256xf32>
      %300 = vector.extract_strided_slice %281 {offsets = [0, 64], sizes = [2, 256], strides = [1, 1]} : vector<2x358xf32> to vector<2x256xf32>
      %c77 = arith.constant 77 : index
      %301 = memref.load %arg2[%c77] : memref<98xf32, #tpu.memory_space<smem>>
      %302 = vector.broadcast %301 : f32 to vector<2x256xf32>
      %303 = arith.mulf %302, %300 : vector<2x256xf32>
      %304 = arith.addf %294, %303 : vector<2x256xf32>
      %305 = vector.extract_strided_slice %281 {offsets = [0, 80], sizes = [2, 256], strides = [1, 1]} : vector<2x358xf32> to vector<2x256xf32>
      %c84 = arith.constant 84 : index
      %306 = memref.load %arg2[%c84] : memref<98xf32, #tpu.memory_space<smem>>
      %307 = vector.broadcast %306 : f32 to vector<2x256xf32>
      %308 = arith.mulf %307, %305 : vector<2x256xf32>
      %309 = arith.addf %299, %308 : vector<2x256xf32>
      %310 = vector.extract_strided_slice %281 {offsets = [0, 96], sizes = [2, 256], strides = [1, 1]} : vector<2x358xf32> to vector<2x256xf32>
      %c91 = arith.constant 91 : index
      %311 = memref.load %arg2[%c91] : memref<98xf32, #tpu.memory_space<smem>>
      %312 = vector.broadcast %311 : f32 to vector<2x256xf32>
      %313 = arith.mulf %312, %310 : vector<2x256xf32>
      %314 = arith.addf %304, %313 : vector<2x256xf32>
      %c0_28 = arith.constant 0 : index
      %c0_29 = arith.constant 0 : index
      %315 = vector.load %arg4[%c0_28, %c0_29] : memref<7x256xf32, #tpu.memory_space<vmem>>, vector<1x256xf32>
      %316 = arith.addf %314, %309 : vector<2x256xf32>
      %317 = vector.broadcast %315 : vector<1x256xf32> to vector<2x256xf32>
      %318 = arith.mulf %317, %316 : vector<2x256xf32>
      %319 = vector.extract_strided_slice %281 {offsets = [0, 1], sizes = [2, 256], strides = [1, 1]} : vector<2x358xf32> to vector<2x256xf32>
      %c50 = arith.constant 50 : index
      %320 = memref.load %arg2[%c50] : memref<98xf32, #tpu.memory_space<smem>>
      %321 = vector.broadcast %320 : f32 to vector<2x256xf32>
      %322 = arith.mulf %321, %319 : vector<2x256xf32>
      %323 = vector.extract_strided_slice %281 {offsets = [0, 17], sizes = [2, 256], strides = [1, 1]} : vector<2x358xf32> to vector<2x256xf32>
      %c57 = arith.constant 57 : index
      %324 = memref.load %arg2[%c57] : memref<98xf32, #tpu.memory_space<smem>>
      %325 = vector.broadcast %324 : f32 to vector<2x256xf32>
      %326 = arith.mulf %325, %323 : vector<2x256xf32>
      %327 = vector.extract_strided_slice %281 {offsets = [0, 33], sizes = [2, 256], strides = [1, 1]} : vector<2x358xf32> to vector<2x256xf32>
      %c64 = arith.constant 64 : index
      %328 = memref.load %arg2[%c64] : memref<98xf32, #tpu.memory_space<smem>>
      %329 = vector.broadcast %328 : f32 to vector<2x256xf32>
      %330 = arith.mulf %329, %327 : vector<2x256xf32>
      %331 = arith.addf %322, %330 : vector<2x256xf32>
      %332 = vector.extract_strided_slice %281 {offsets = [0, 49], sizes = [2, 256], strides = [1, 1]} : vector<2x358xf32> to vector<2x256xf32>
      %c71 = arith.constant 71 : index
      %333 = memref.load %arg2[%c71] : memref<98xf32, #tpu.memory_space<smem>>
      %334 = vector.broadcast %333 : f32 to vector<2x256xf32>
      %335 = arith.mulf %334, %332 : vector<2x256xf32>
      %336 = arith.addf %326, %335 : vector<2x256xf32>
      %337 = vector.extract_strided_slice %281 {offsets = [0, 65], sizes = [2, 256], strides = [1, 1]} : vector<2x358xf32> to vector<2x256xf32>
      %c78 = arith.constant 78 : index
      %338 = memref.load %arg2[%c78] : memref<98xf32, #tpu.memory_space<smem>>
      %339 = vector.broadcast %338 : f32 to vector<2x256xf32>
      %340 = arith.mulf %339, %337 : vector<2x256xf32>
      %341 = arith.addf %331, %340 : vector<2x256xf32>
      %342 = vector.extract_strided_slice %281 {offsets = [0, 81], sizes = [2, 256], strides = [1, 1]} : vector<2x358xf32> to vector<2x256xf32>
      %c85 = arith.constant 85 : index
      %343 = memref.load %arg2[%c85] : memref<98xf32, #tpu.memory_space<smem>>
      %344 = vector.broadcast %343 : f32 to vector<2x256xf32>
      %345 = arith.mulf %344, %342 : vector<2x256xf32>
      %346 = arith.addf %336, %345 : vector<2x256xf32>
      %347 = vector.extract_strided_slice %281 {offsets = [0, 97], sizes = [2, 256], strides = [1, 1]} : vector<2x358xf32> to vector<2x256xf32>
      %c92 = arith.constant 92 : index
      %348 = memref.load %arg2[%c92] : memref<98xf32, #tpu.memory_space<smem>>
      %349 = vector.broadcast %348 : f32 to vector<2x256xf32>
      %350 = arith.mulf %349, %347 : vector<2x256xf32>
      %351 = arith.addf %341, %350 : vector<2x256xf32>
      %c1_30 = arith.constant 1 : index
      %c0_31 = arith.constant 0 : index
      %352 = vector.load %arg4[%c1_30, %c0_31] : memref<7x256xf32, #tpu.memory_space<vmem>>, vector<1x256xf32>
      %353 = arith.addf %351, %346 : vector<2x256xf32>
      %354 = vector.broadcast %352 : vector<1x256xf32> to vector<2x256xf32>
      %355 = arith.mulf %354, %353 : vector<2x256xf32>
      %356 = arith.addf %318, %355 : vector<2x256xf32>
      %357 = vector.extract_strided_slice %281 {offsets = [0, 2], sizes = [2, 256], strides = [1, 1]} : vector<2x358xf32> to vector<2x256xf32>
      %c51 = arith.constant 51 : index
      %358 = memref.load %arg2[%c51] : memref<98xf32, #tpu.memory_space<smem>>
      %359 = vector.broadcast %358 : f32 to vector<2x256xf32>
      %360 = arith.mulf %359, %357 : vector<2x256xf32>
      %361 = vector.extract_strided_slice %281 {offsets = [0, 18], sizes = [2, 256], strides = [1, 1]} : vector<2x358xf32> to vector<2x256xf32>
      %c58 = arith.constant 58 : index
      %362 = memref.load %arg2[%c58] : memref<98xf32, #tpu.memory_space<smem>>
      %363 = vector.broadcast %362 : f32 to vector<2x256xf32>
      %364 = arith.mulf %363, %361 : vector<2x256xf32>
      %365 = vector.extract_strided_slice %281 {offsets = [0, 34], sizes = [2, 256], strides = [1, 1]} : vector<2x358xf32> to vector<2x256xf32>
      %c65 = arith.constant 65 : index
      %366 = memref.load %arg2[%c65] : memref<98xf32, #tpu.memory_space<smem>>
      %367 = vector.broadcast %366 : f32 to vector<2x256xf32>
      %368 = arith.mulf %367, %365 : vector<2x256xf32>
      %369 = arith.addf %360, %368 : vector<2x256xf32>
      %370 = vector.extract_strided_slice %281 {offsets = [0, 50], sizes = [2, 256], strides = [1, 1]} : vector<2x358xf32> to vector<2x256xf32>
      %c72 = arith.constant 72 : index
      %371 = memref.load %arg2[%c72] : memref<98xf32, #tpu.memory_space<smem>>
      %372 = vector.broadcast %371 : f32 to vector<2x256xf32>
      %373 = arith.mulf %372, %370 : vector<2x256xf32>
      %374 = arith.addf %364, %373 : vector<2x256xf32>
      %375 = vector.extract_strided_slice %281 {offsets = [0, 66], sizes = [2, 256], strides = [1, 1]} : vector<2x358xf32> to vector<2x256xf32>
      %c79 = arith.constant 79 : index
      %376 = memref.load %arg2[%c79] : memref<98xf32, #tpu.memory_space<smem>>
      %377 = vector.broadcast %376 : f32 to vector<2x256xf32>
      %378 = arith.mulf %377, %375 : vector<2x256xf32>
      %379 = arith.addf %369, %378 : vector<2x256xf32>
      %380 = vector.extract_strided_slice %281 {offsets = [0, 82], sizes = [2, 256], strides = [1, 1]} : vector<2x358xf32> to vector<2x256xf32>
      %c86 = arith.constant 86 : index
      %381 = memref.load %arg2[%c86] : memref<98xf32, #tpu.memory_space<smem>>
      %382 = vector.broadcast %381 : f32 to vector<2x256xf32>
      %383 = arith.mulf %382, %380 : vector<2x256xf32>
      %384 = arith.addf %374, %383 : vector<2x256xf32>
      %385 = vector.extract_strided_slice %281 {offsets = [0, 98], sizes = [2, 256], strides = [1, 1]} : vector<2x358xf32> to vector<2x256xf32>
      %c93 = arith.constant 93 : index
      %386 = memref.load %arg2[%c93] : memref<98xf32, #tpu.memory_space<smem>>
      %387 = vector.broadcast %386 : f32 to vector<2x256xf32>
      %388 = arith.mulf %387, %385 : vector<2x256xf32>
      %389 = arith.addf %379, %388 : vector<2x256xf32>
      %c2_32 = arith.constant 2 : index
      %c0_33 = arith.constant 0 : index
      %390 = vector.load %arg4[%c2_32, %c0_33] : memref<7x256xf32, #tpu.memory_space<vmem>>, vector<1x256xf32>
      %391 = arith.addf %389, %384 : vector<2x256xf32>
      %392 = vector.broadcast %390 : vector<1x256xf32> to vector<2x256xf32>
      %393 = arith.mulf %392, %391 : vector<2x256xf32>
      %394 = arith.addf %356, %393 : vector<2x256xf32>
      %395 = vector.extract_strided_slice %281 {offsets = [0, 3], sizes = [2, 256], strides = [1, 1]} : vector<2x358xf32> to vector<2x256xf32>
      %c52 = arith.constant 52 : index
      %396 = memref.load %arg2[%c52] : memref<98xf32, #tpu.memory_space<smem>>
      %397 = vector.broadcast %396 : f32 to vector<2x256xf32>
      %398 = arith.mulf %397, %395 : vector<2x256xf32>
      %399 = vector.extract_strided_slice %281 {offsets = [0, 19], sizes = [2, 256], strides = [1, 1]} : vector<2x358xf32> to vector<2x256xf32>
      %c59 = arith.constant 59 : index
      %400 = memref.load %arg2[%c59] : memref<98xf32, #tpu.memory_space<smem>>
      %401 = vector.broadcast %400 : f32 to vector<2x256xf32>
      %402 = arith.mulf %401, %399 : vector<2x256xf32>
      %403 = vector.extract_strided_slice %281 {offsets = [0, 35], sizes = [2, 256], strides = [1, 1]} : vector<2x358xf32> to vector<2x256xf32>
      %c66 = arith.constant 66 : index
      %404 = memref.load %arg2[%c66] : memref<98xf32, #tpu.memory_space<smem>>
      %405 = vector.broadcast %404 : f32 to vector<2x256xf32>
      %406 = arith.mulf %405, %403 : vector<2x256xf32>
      %407 = arith.addf %398, %406 : vector<2x256xf32>
      %408 = vector.extract_strided_slice %281 {offsets = [0, 51], sizes = [2, 256], strides = [1, 1]} : vector<2x358xf32> to vector<2x256xf32>
      %c73 = arith.constant 73 : index
      %409 = memref.load %arg2[%c73] : memref<98xf32, #tpu.memory_space<smem>>
      %410 = vector.broadcast %409 : f32 to vector<2x256xf32>
      %411 = arith.mulf %410, %408 : vector<2x256xf32>
      %412 = arith.addf %402, %411 : vector<2x256xf32>
      %413 = vector.extract_strided_slice %281 {offsets = [0, 67], sizes = [2, 256], strides = [1, 1]} : vector<2x358xf32> to vector<2x256xf32>
      %c80 = arith.constant 80 : index
      %414 = memref.load %arg2[%c80] : memref<98xf32, #tpu.memory_space<smem>>
      %415 = vector.broadcast %414 : f32 to vector<2x256xf32>
      %416 = arith.mulf %415, %413 : vector<2x256xf32>
      %417 = arith.addf %407, %416 : vector<2x256xf32>
      %418 = vector.extract_strided_slice %281 {offsets = [0, 83], sizes = [2, 256], strides = [1, 1]} : vector<2x358xf32> to vector<2x256xf32>
      %c87 = arith.constant 87 : index
      %419 = memref.load %arg2[%c87] : memref<98xf32, #tpu.memory_space<smem>>
      %420 = vector.broadcast %419 : f32 to vector<2x256xf32>
      %421 = arith.mulf %420, %418 : vector<2x256xf32>
      %422 = arith.addf %412, %421 : vector<2x256xf32>
      %423 = vector.extract_strided_slice %281 {offsets = [0, 99], sizes = [2, 256], strides = [1, 1]} : vector<2x358xf32> to vector<2x256xf32>
      %c94 = arith.constant 94 : index
      %424 = memref.load %arg2[%c94] : memref<98xf32, #tpu.memory_space<smem>>
      %425 = vector.broadcast %424 : f32 to vector<2x256xf32>
      %426 = arith.mulf %425, %423 : vector<2x256xf32>
      %427 = arith.addf %417, %426 : vector<2x256xf32>
      %c3_34 = arith.constant 3 : index
      %c0_35 = arith.constant 0 : index
      %428 = vector.load %arg4[%c3_34, %c0_35] : memref<7x256xf32, #tpu.memory_space<vmem>>, vector<1x256xf32>
      %429 = arith.addf %427, %422 : vector<2x256xf32>
      %430 = vector.broadcast %428 : vector<1x256xf32> to vector<2x256xf32>
      %431 = arith.mulf %430, %429 : vector<2x256xf32>
      %432 = arith.addf %394, %431 : vector<2x256xf32>
      %433 = vector.extract_strided_slice %281 {offsets = [0, 4], sizes = [2, 256], strides = [1, 1]} : vector<2x358xf32> to vector<2x256xf32>
      %c53 = arith.constant 53 : index
      %434 = memref.load %arg2[%c53] : memref<98xf32, #tpu.memory_space<smem>>
      %435 = vector.broadcast %434 : f32 to vector<2x256xf32>
      %436 = arith.mulf %435, %433 : vector<2x256xf32>
      %437 = vector.extract_strided_slice %281 {offsets = [0, 20], sizes = [2, 256], strides = [1, 1]} : vector<2x358xf32> to vector<2x256xf32>
      %c60 = arith.constant 60 : index
      %438 = memref.load %arg2[%c60] : memref<98xf32, #tpu.memory_space<smem>>
      %439 = vector.broadcast %438 : f32 to vector<2x256xf32>
      %440 = arith.mulf %439, %437 : vector<2x256xf32>
      %441 = vector.extract_strided_slice %281 {offsets = [0, 36], sizes = [2, 256], strides = [1, 1]} : vector<2x358xf32> to vector<2x256xf32>
      %c67 = arith.constant 67 : index
      %442 = memref.load %arg2[%c67] : memref<98xf32, #tpu.memory_space<smem>>
      %443 = vector.broadcast %442 : f32 to vector<2x256xf32>
      %444 = arith.mulf %443, %441 : vector<2x256xf32>
      %445 = arith.addf %436, %444 : vector<2x256xf32>
      %446 = vector.extract_strided_slice %281 {offsets = [0, 52], sizes = [2, 256], strides = [1, 1]} : vector<2x358xf32> to vector<2x256xf32>
      %c74 = arith.constant 74 : index
      %447 = memref.load %arg2[%c74] : memref<98xf32, #tpu.memory_space<smem>>
      %448 = vector.broadcast %447 : f32 to vector<2x256xf32>
      %449 = arith.mulf %448, %446 : vector<2x256xf32>
      %450 = arith.addf %440, %449 : vector<2x256xf32>
      %451 = vector.extract_strided_slice %281 {offsets = [0, 68], sizes = [2, 256], strides = [1, 1]} : vector<2x358xf32> to vector<2x256xf32>
      %c81 = arith.constant 81 : index
      %452 = memref.load %arg2[%c81] : memref<98xf32, #tpu.memory_space<smem>>
      %453 = vector.broadcast %452 : f32 to vector<2x256xf32>
      %454 = arith.mulf %453, %451 : vector<2x256xf32>
      %455 = arith.addf %445, %454 : vector<2x256xf32>
      %456 = vector.extract_strided_slice %281 {offsets = [0, 84], sizes = [2, 256], strides = [1, 1]} : vector<2x358xf32> to vector<2x256xf32>
      %c88 = arith.constant 88 : index
      %457 = memref.load %arg2[%c88] : memref<98xf32, #tpu.memory_space<smem>>
      %458 = vector.broadcast %457 : f32 to vector<2x256xf32>
      %459 = arith.mulf %458, %456 : vector<2x256xf32>
      %460 = arith.addf %450, %459 : vector<2x256xf32>
      %461 = vector.extract_strided_slice %281 {offsets = [0, 100], sizes = [2, 256], strides = [1, 1]} : vector<2x358xf32> to vector<2x256xf32>
      %c95 = arith.constant 95 : index
      %462 = memref.load %arg2[%c95] : memref<98xf32, #tpu.memory_space<smem>>
      %463 = vector.broadcast %462 : f32 to vector<2x256xf32>
      %464 = arith.mulf %463, %461 : vector<2x256xf32>
      %465 = arith.addf %455, %464 : vector<2x256xf32>
      %c4_36 = arith.constant 4 : index
      %c0_37 = arith.constant 0 : index
      %466 = vector.load %arg4[%c4_36, %c0_37] : memref<7x256xf32, #tpu.memory_space<vmem>>, vector<1x256xf32>
      %467 = arith.addf %465, %460 : vector<2x256xf32>
      %468 = vector.broadcast %466 : vector<1x256xf32> to vector<2x256xf32>
      %469 = arith.mulf %468, %467 : vector<2x256xf32>
      %470 = arith.addf %432, %469 : vector<2x256xf32>
      %471 = vector.extract_strided_slice %281 {offsets = [0, 5], sizes = [2, 256], strides = [1, 1]} : vector<2x358xf32> to vector<2x256xf32>
      %c54 = arith.constant 54 : index
      %472 = memref.load %arg2[%c54] : memref<98xf32, #tpu.memory_space<smem>>
      %473 = vector.broadcast %472 : f32 to vector<2x256xf32>
      %474 = arith.mulf %473, %471 : vector<2x256xf32>
      %475 = vector.extract_strided_slice %281 {offsets = [0, 21], sizes = [2, 256], strides = [1, 1]} : vector<2x358xf32> to vector<2x256xf32>
      %c61 = arith.constant 61 : index
      %476 = memref.load %arg2[%c61] : memref<98xf32, #tpu.memory_space<smem>>
      %477 = vector.broadcast %476 : f32 to vector<2x256xf32>
      %478 = arith.mulf %477, %475 : vector<2x256xf32>
      %479 = vector.extract_strided_slice %281 {offsets = [0, 37], sizes = [2, 256], strides = [1, 1]} : vector<2x358xf32> to vector<2x256xf32>
      %c68 = arith.constant 68 : index
      %480 = memref.load %arg2[%c68] : memref<98xf32, #tpu.memory_space<smem>>
      %481 = vector.broadcast %480 : f32 to vector<2x256xf32>
      %482 = arith.mulf %481, %479 : vector<2x256xf32>
      %483 = arith.addf %474, %482 : vector<2x256xf32>
      %484 = vector.extract_strided_slice %281 {offsets = [0, 53], sizes = [2, 256], strides = [1, 1]} : vector<2x358xf32> to vector<2x256xf32>
      %c75 = arith.constant 75 : index
      %485 = memref.load %arg2[%c75] : memref<98xf32, #tpu.memory_space<smem>>
      %486 = vector.broadcast %485 : f32 to vector<2x256xf32>
      %487 = arith.mulf %486, %484 : vector<2x256xf32>
      %488 = arith.addf %478, %487 : vector<2x256xf32>
      %489 = vector.extract_strided_slice %281 {offsets = [0, 69], sizes = [2, 256], strides = [1, 1]} : vector<2x358xf32> to vector<2x256xf32>
      %c82 = arith.constant 82 : index
      %490 = memref.load %arg2[%c82] : memref<98xf32, #tpu.memory_space<smem>>
      %491 = vector.broadcast %490 : f32 to vector<2x256xf32>
      %492 = arith.mulf %491, %489 : vector<2x256xf32>
      %493 = arith.addf %483, %492 : vector<2x256xf32>
      %494 = vector.extract_strided_slice %281 {offsets = [0, 85], sizes = [2, 256], strides = [1, 1]} : vector<2x358xf32> to vector<2x256xf32>
      %c89 = arith.constant 89 : index
      %495 = memref.load %arg2[%c89] : memref<98xf32, #tpu.memory_space<smem>>
      %496 = vector.broadcast %495 : f32 to vector<2x256xf32>
      %497 = arith.mulf %496, %494 : vector<2x256xf32>
      %498 = arith.addf %488, %497 : vector<2x256xf32>
      %499 = vector.extract_strided_slice %281 {offsets = [0, 101], sizes = [2, 256], strides = [1, 1]} : vector<2x358xf32> to vector<2x256xf32>
      %c96 = arith.constant 96 : index
      %500 = memref.load %arg2[%c96] : memref<98xf32, #tpu.memory_space<smem>>
      %501 = vector.broadcast %500 : f32 to vector<2x256xf32>
      %502 = arith.mulf %501, %499 : vector<2x256xf32>
      %503 = arith.addf %493, %502 : vector<2x256xf32>
      %c5_38 = arith.constant 5 : index
      %c0_39 = arith.constant 0 : index
      %504 = vector.load %arg4[%c5_38, %c0_39] : memref<7x256xf32, #tpu.memory_space<vmem>>, vector<1x256xf32>
      %505 = arith.addf %503, %498 : vector<2x256xf32>
      %506 = vector.broadcast %504 : vector<1x256xf32> to vector<2x256xf32>
      %507 = arith.mulf %506, %505 : vector<2x256xf32>
      %508 = arith.addf %470, %507 : vector<2x256xf32>
      %509 = vector.extract_strided_slice %281 {offsets = [0, 6], sizes = [2, 256], strides = [1, 1]} : vector<2x358xf32> to vector<2x256xf32>
      %c55 = arith.constant 55 : index
      %510 = memref.load %arg2[%c55] : memref<98xf32, #tpu.memory_space<smem>>
      %511 = vector.broadcast %510 : f32 to vector<2x256xf32>
      %512 = arith.mulf %511, %509 : vector<2x256xf32>
      %513 = vector.extract_strided_slice %281 {offsets = [0, 22], sizes = [2, 256], strides = [1, 1]} : vector<2x358xf32> to vector<2x256xf32>
      %c62 = arith.constant 62 : index
      %514 = memref.load %arg2[%c62] : memref<98xf32, #tpu.memory_space<smem>>
      %515 = vector.broadcast %514 : f32 to vector<2x256xf32>
      %516 = arith.mulf %515, %513 : vector<2x256xf32>
      %517 = vector.extract_strided_slice %281 {offsets = [0, 38], sizes = [2, 256], strides = [1, 1]} : vector<2x358xf32> to vector<2x256xf32>
      %c69 = arith.constant 69 : index
      %518 = memref.load %arg2[%c69] : memref<98xf32, #tpu.memory_space<smem>>
      %519 = vector.broadcast %518 : f32 to vector<2x256xf32>
      %520 = arith.mulf %519, %517 : vector<2x256xf32>
      %521 = arith.addf %512, %520 : vector<2x256xf32>
      %522 = vector.extract_strided_slice %281 {offsets = [0, 54], sizes = [2, 256], strides = [1, 1]} : vector<2x358xf32> to vector<2x256xf32>
      %c76 = arith.constant 76 : index
      %523 = memref.load %arg2[%c76] : memref<98xf32, #tpu.memory_space<smem>>
      %524 = vector.broadcast %523 : f32 to vector<2x256xf32>
      %525 = arith.mulf %524, %522 : vector<2x256xf32>
      %526 = arith.addf %516, %525 : vector<2x256xf32>
      %527 = vector.extract_strided_slice %281 {offsets = [0, 70], sizes = [2, 256], strides = [1, 1]} : vector<2x358xf32> to vector<2x256xf32>
      %c83 = arith.constant 83 : index
      %528 = memref.load %arg2[%c83] : memref<98xf32, #tpu.memory_space<smem>>
      %529 = vector.broadcast %528 : f32 to vector<2x256xf32>
      %530 = arith.mulf %529, %527 : vector<2x256xf32>
      %531 = arith.addf %521, %530 : vector<2x256xf32>
      %532 = vector.extract_strided_slice %281 {offsets = [0, 86], sizes = [2, 256], strides = [1, 1]} : vector<2x358xf32> to vector<2x256xf32>
      %c90 = arith.constant 90 : index
      %533 = memref.load %arg2[%c90] : memref<98xf32, #tpu.memory_space<smem>>
      %534 = vector.broadcast %533 : f32 to vector<2x256xf32>
      %535 = arith.mulf %534, %532 : vector<2x256xf32>
      %536 = arith.addf %526, %535 : vector<2x256xf32>
      %537 = vector.extract_strided_slice %281 {offsets = [0, 102], sizes = [2, 256], strides = [1, 1]} : vector<2x358xf32> to vector<2x256xf32>
      %c97 = arith.constant 97 : index
      %538 = memref.load %arg2[%c97] : memref<98xf32, #tpu.memory_space<smem>>
      %539 = vector.broadcast %538 : f32 to vector<2x256xf32>
      %540 = arith.mulf %539, %537 : vector<2x256xf32>
      %541 = arith.addf %531, %540 : vector<2x256xf32>
      %c6_40 = arith.constant 6 : index
      %c0_41 = arith.constant 0 : index
      %542 = vector.load %arg4[%c6_40, %c0_41] : memref<7x256xf32, #tpu.memory_space<vmem>>, vector<1x256xf32>
      %543 = arith.addf %541, %536 : vector<2x256xf32>
      %544 = vector.broadcast %542 : vector<1x256xf32> to vector<2x256xf32>
      %545 = arith.mulf %544, %543 : vector<2x256xf32>
      %546 = arith.addf %508, %545 : vector<2x256xf32>
      %547 = arith.addf %279, %546 : vector<2x256xf32>
      %c0_42 = arith.constant 0 : index
      %548 = memref.load %arg3[%c0_42] : memref<1xf32, #tpu.memory_space<smem>>
      %549 = vector.broadcast %548 : f32 to vector<2x256xf32>
      %550 = arith.addf %547, %549 : vector<2x256xf32>
      %551 = arith.negf %550 : vector<2x256xf32>
      %552 = math.exp %551 : vector<2x256xf32>
      %cst_43 = arith.constant 1.000000e+00 : f32
      %553 = vector.broadcast %cst_43 : f32 to vector<2x256xf32>
      %554 = arith.addf %553, %552 : vector<2x256xf32>
      %555 = arith.divf %553, %554 : vector<2x256xf32>
      %c0_44 = arith.constant 0 : index
      %c0_45 = arith.constant 0 : index
      %556 = vector.load %arg6[%c0_44, %c0_45] : memref<2x256xf32, #tpu.memory_space<vmem>>, vector<2x256xf32>
      tpu.vector_store %arg6[%c0_44, %c0_45], %555 {strides = array<i32>} : memref<2x256xf32, #tpu.memory_space<vmem>>, vector<2x256xf32>,
    } else {
    }
    return
  }
  func.func @transform_0(%arg0: i32, %arg1: i32) -> i32 {
    %c0_i32 = arith.constant 0 : i32
    %c0_i32_0 = arith.constant 0 : i32
    return %c0_i32 : i32
  }
  func.func @transform_1(%arg0: i32, %arg1: i32) -> i32 {
    %c0_i32 = arith.constant 0 : i32
    %c0_i32_0 = arith.constant 0 : i32
    return %c0_i32 : i32
  }
  func.func @transform_2(%arg0: i32, %arg1: i32) -> (i32, i32) {
    %c0_i32 = arith.constant 0 : i32
    %c0_i32_0 = arith.constant 0 : i32
    %c0_i32_1 = arith.constant 0 : i32
    return %c0_i32, %c0_i32_0 : i32, i32
  }
  func.func @transform_3(%arg0: i32, %arg1: i32) -> (i32, i32, i32) {
    %c0_i32 = arith.constant 0 : i32
    %c0_i32_0 = arith.constant 0 : i32
    return %arg0, %arg1, %c0_i32 : i32, i32, i32
  }
  func.func @transform_4(%arg0: i32, %arg1: i32) -> (i32, i32) {
    %c0_i32 = arith.constant 0 : i32
    %c0_i32_0 = arith.constant 0 : i32
    return %arg0, %c0_i32 : i32, i32
  }
}

</mosaic_0001>

<llo_original>
// kernel: tpu_custom_call.1
$region0: #{tpu_custom_call.1}
  #allocation0 [shape = 'u32[]', space=smem, size = 0x4, offset = 0x4, fixed_abs, tag = 'smem constant byte address 0x4 - core index']
  #allocation1 [shape = 'u32[144,128]{1,0:T(1,128)}', space=vmem, size = 0x12000, scoped, tag = 'internal scratch']
  #allocation2 [shape = 'f32[2,256]{1,0:T(2,128)}', space=vmem, size = 0x800, scoped, tag = 'scratch operand']
  #allocation3 [shape = 'f32[2,256]{1,0:T(2,128)}', space=vmem, size = 0x800, scoped, tag = 'scratch operand']
  #allocation4 [shape = 'f32[1]{0:T(128)S(6)}', space=smem, size = 0x200, scoped, tag = 'scoped memory for tpu_custom_call.1']
  %s0 = inlined_call_operand.vmem [shape: f32[98], index: 0, kind: input, shape index: {}]
  %s1 = inlined_call_operand.<no memory space> [shape: f32[1], index: 1, kind: input, shape index: {}]
  %s2 = inlined_call_operand.hbm [shape: f32[7,256], index: 2, kind: input, shape index: {}]
  %s3 = inlined_call_operand.hbm [shape: f32[2,4,256], index: 3, kind: input, shape index: {}]
  %s4 = inlined_call_operand.hbm [shape: f32[2,256], index: 4, kind: output, shape index: {}]
  %s5 = sld [smem:[#allocation0]]
  $region50: #{tpu_custom_call.1} parent=0
    _
  %s7 = ssub.s32 1, %s5
  %s8 = scalar_select 0, %s7, %s5
  %9 = sst [smem:[#allocation4]] %s1
  $region1: #{tpu_custom_call.1} parent=0
    #allocation5 [shape = 'u8[512]{0}', space=smem, size = 0x200, scoped, tag = 'input window, operand 0, single buffered']
    #allocation6 [shape = 's32[1]{0}', space=sflag, size = 0x4, scoped, tag = 'scoped memory for tpu_custom_call.1']
    #allocation7 [shape = 's32[1]{0}', space=sflag, size = 0x4, scoped, tag = 'scoped memory for tpu_custom_call.1']
    #allocation8 [shape = 's32[1]{0}', space=sflag, size = 0x4, scoped, tag = 'scoped memory for tpu_custom_call.1']
    #allocation9 [shape = 'u8[8192]{0}', space=vmem, size = 0x2000, scoped, tag = 'input window, operand 2, single buffered']
    #allocation10 [shape = 'u8[8192]{0}', space=vmem, size = 0x2000, scoped, tag = 'input window, operand 3, single buffered']
    #allocation11 [shape = 's32[1]{0}', space=sflag, size = 0x4, scoped, tag = 'scoped memory for tpu_custom_call.1']
    #allocation12 [shape = 'u8[2048]{0}', space=vmem, size = 0x800, scoped, tag = 'output window, operand 0, single buffered']
    %10 = vsyncpa [#allocation8], 0
    %11 = vsyncpa [#allocation6], 0
    %12 = vsyncpa [#allocation11], 0
    %13 = vsyncpa [#allocation7], 0
    // Predicated region
    $region2: #{tpu_custom_call.1} parent=1 // pred_check
      _
    $region3: #{tpu_custom_call.1} parent=1 // pred_check_branch
      %15 = sbr.rel (0) target = $region5
    $region4: #{tpu_custom_call.1} parent=1 // pred_region
      %s17 = ssub.s32 16, 16
      %18 = vsyncadd [#allocation8], %s17
      %s20 = sshll.u32 %s0, 4
      %s21 = int_to_ptr.vmem [resolvable:$true] %s20
      %23 = dma.vmem_to_smem %s21, 16, [#allocation5], [#allocation8]
    $region5: #{tpu_custom_call.1} parent=1 // pred_fallthru
      _
    // Predicated region
    $region6: #{tpu_custom_call.1} parent=1 // pred_check
      _
    $region7: #{tpu_custom_call.1} parent=1 // pred_check_branch
      %25 = sbr.rel (0) target = $region9
    $region8: #{tpu_custom_call.1} parent=1 // pred_region
      _
    $region9: #{tpu_custom_call.1} parent=1 // pred_fallthru
      _
    // Predicated region
    $region10: #{tpu_custom_call.1} parent=1 // pred_check
      _
    $region11: #{tpu_custom_call.1} parent=1 // pred_check_branch
      %27 = sbr.rel (0) target = $region13
    $region12: #{tpu_custom_call.1} parent=1 // pred_region
      %s29 = ssub.s32 256, 256
      %30 = vsyncadd [#allocation6], %s29
      %s32 = sshll.u32 [#allocation9], 4
      %s33 = int_to_ptr.vmem [resolvable:$true] %s32
      %35 = dma.hbm_to_vmem [thread:$0]  %s2, 256, %s33, [#allocation6]
    $region13: #{tpu_custom_call.1} parent=1 // pred_fallthru
      _
    // Predicated region
    $region14: #{tpu_custom_call.1} parent=1 // pred_check
      _
    $region15: #{tpu_custom_call.1} parent=1 // pred_check_branch
      %37 = sbr.rel (0) target = $region17
    $region16: #{tpu_custom_call.1} parent=1 // pred_region
      %s39 = ssub.s32 256, 256
      %40 = vsyncadd [#allocation11], %s39
      %s41 = sshll.u32 [#allocation10], 4
      %s42 = int_to_ptr.vmem [resolvable:$true] %s41
      %47 = dma.hbm_to_vmem [thread:$0]  %s3, 256, %s42, [#allocation11], 128, 128, 8
    $region17: #{tpu_custom_call.1} parent=1 // pred_fallthru
      _
    // Predicated region
    $region18: #{tpu_custom_call.1} parent=1 // pred_check
      _
    $region19: #{tpu_custom_call.1} parent=1 // pred_check_branch
      %49 = sbr.rel (0) target = $region21
    $region20: #{tpu_custom_call.1} parent=1 // pred_region
      %50 = dma.done [#allocation8], 16
    $region21: #{tpu_custom_call.1} parent=1 // pred_fallthru
      _
    // Predicated region
    $region22: #{tpu_custom_call.1} parent=1 // pred_check
      _
    $region23: #{tpu_custom_call.1} parent=1 // pred_check_branch
      %52 = sbr.rel (0) target = $region25
    $region24: #{tpu_custom_call.1} parent=1 // pred_region
      %53 = dma.done [#allocation6], 256
    $region25: #{tpu_custom_call.1} parent=1 // pred_fallthru
      _
    // Predicated region
    $region26: #{tpu_custom_call.1} parent=1 // pred_check
      _
    $region27: #{tpu_custom_call.1} parent=1 // pred_check_branch
      %55 = sbr.rel (0) target = $region29
    $region28: #{tpu_custom_call.1} parent=1 // pred_region
      %56 = dma.done [#allocation11], 256
    $region29: #{tpu_custom_call.1} parent=1 // pred_fallthru
      _
    %57 = sfence
    %v58 = vld [vmem:[#allocation10] sm:$0xff]
    %v59 = vld [vmem:[#allocation10 + $0x8] sm:$0xff]
    %v62 = vcombine.high %v58, %v58
    %v63 = vcombine.high %v59, %v59
    %vm66 = vcmask 1043456
    %v67 = vsel %vm66, %v58, 0.0
    %v68 = vrot.slane %v67, 4
    %v69 = vadd.f32 %v67, %v68
    %v70 = vrot.slane %v69, 2
    %v71 = vadd.f32 %v69, %v70
    %v72 = vrot.slane %v71, 1
    %v73 = vadd.f32 %v71, %v72
    %v74 = vsel %vm66, %v62, 0.0
    %v75 = vrot.slane %v74, 4
    %v76 = vadd.f32 %v74, %v75
    %v77 = vrot.slane %v76, 2
    %v78 = vadd.f32 %v76, %v77
    %v79 = vrot.slane %v78, 1
    %v80 = vadd.f32 %v78, %v79
    %v81 = vsel %vm66, %v59, 0.0
    %v82 = vrot.slane %v81, 4
    %v83 = vadd.f32 %v81, %v82
    %v84 = vrot.slane %v83, 2
    %v85 = vadd.f32 %v83, %v84
    %v86 = vrot.slane %v85, 1
    %v87 = vadd.f32 %v85, %v86
    %v88 = vsel %vm66, %v63, 0.0
    %v89 = vrot.slane %v88, 4
    %v90 = vadd.f32 %v88, %v89
    %v91 = vrot.slane %v90, 2
    %v92 = vadd.f32 %v90, %v91
    %v93 = vrot.slane %v92, 1
    %v94 = vadd.f32 %v92, %v93
    %v95 = vsel %vm66, %v58, -inf
    %v96 = vrot.slane %v95, 4
    %v97 = vmax.f32 %v95, %v96
    %v98 = vrot.slane %v97, 2
    %v99 = vmax.f32 %v97, %v98
    %v100 = vrot.slane %v99, 1
    %v101 = vmax.f32 %v99, %v100
    %v102 = vsel %vm66, %v62, -inf
    %v103 = vrot.slane %v102, 4
    %v104 = vmax.f32 %v102, %v103
    %v105 = vrot.slane %v104, 2
    %v106 = vmax.f32 %v104, %v105
    %v107 = vrot.slane %v106, 1
    %v108 = vmax.f32 %v106, %v107
    %v109 = vsel %vm66, %v59, -inf
    %v110 = vrot.slane %v109, 4
    %v111 = vmax.f32 %v109, %v110
    %v112 = vrot.slane %v111, 2
    %v113 = vmax.f32 %v111, %v112
    %v114 = vrot.slane %v113, 1
    %v115 = vmax.f32 %v113, %v114
    %v116 = vsel %vm66, %v63, -inf
    %v117 = vrot.slane %v116, 4
    %v118 = vmax.f32 %v116, %v117
    %v119 = vrot.slane %v118, 2
    %v120 = vmax.f32 %v118, %v119
    %v121 = vrot.slane %v120, 1
    %v122 = vmax.f32 %v120, %v121
    %p123 = scmp.eq.s32.totalorder 0, 0
    // Predicated region
    $region30: #{tpu_custom_call.1} parent=1 // pred_check
      %p124 = pneg %p123
    $region31: #{tpu_custom_call.1} parent=1 // pred_check_branch
      %126 = sbr.rel (%p124) target = $region33
    $region32: #{tpu_custom_call.1} parent=1 // pred_region
      %v131 = vcombine.low %v73, %v80
      %v133 = vunpack.c.l.s4 1983009808
      %v134 = vunpack.c.0.s8 %v133
      %v135 = vlaneseq
      %v136 = vshrl.u32 %v135, 7
      %v137 = vsub.s32 %v134, %v136
      %v138 = vrot.slane %v131, %v137
      %v139 = vcombine.low %v87, %v94
      %v141 = vunpack.c.l.s4 1983009808
      %v142 = vunpack.c.0.s8 %v141
      %v143 = vlaneseq
      %v144 = vshrl.u32 %v143, 7
      %v145 = vsub.s32 %v142, %v144
      %v146 = vrot.slane %v139, %v145
      %vm147 = vcmask 1044484
      %v148 = vsel %vm147, %v138, %v138
      %vm149 = vcmask 1046534
      %v150 = vsel %vm149, %v138, %v148
      %v151 = vrot.slane %v146, 7
      %vm152 = vcmask 1041409
      %v153 = vsel %vm152, %v151, %v150
      %vm154 = vcmask 1043459
      %v155 = vsel %vm154, %v151, %v153
      %vm156 = vcmask 1045509
      %v157 = vsel %vm156, %v151, %v155
      %vm158 = vcmask 1047559
      %v159 = vsel %vm158, %v151, %v157
      %161 = vst [vmem:[#allocation2] sm:$0xf] %v159
      %v166 = vcombine.low %v101, %v108
      %v168 = vunpack.c.l.s4 1983009808
      %v169 = vunpack.c.0.s8 %v168
      %v170 = vlaneseq
      %v171 = vshrl.u32 %v170, 7
      %v172 = vsub.s32 %v169, %v171
      %v173 = vrot.slane %v166, %v172
      %v174 = vcombine.low %v115, %v122
      %v176 = vunpack.c.l.s4 1983009808
      %v177 = vunpack.c.0.s8 %v176
      %v178 = vlaneseq
      %v179 = vshrl.u32 %v178, 7
      %v180 = vsub.s32 %v177, %v179
      %v181 = vrot.slane %v174, %v180
      %v182 = vsel %vm147, %v173, %v173
      %v183 = vsel %vm149, %v173, %v182
      %v184 = vrot.slane %v181, 7
      %v185 = vsel %vm152, %v184, %v183
      %v186 = vsel %vm154, %v184, %v185
      %v187 = vsel %vm156, %v184, %v186
      %v188 = vsel %vm158, %v184, %v187
      %190 = vst [vmem:[#allocation3] sm:$0xf] %v188
    $region33: #{tpu_custom_call.1} parent=1 // pred_fallthru
      _
    %p191 = scmp.gt.s32.totalorder 0, 0
    // Predicated region
    $region34: #{tpu_custom_call.1} parent=1 // pred_check
      %p192 = pneg %p191
    $region35: #{tpu_custom_call.1} parent=1 // pred_check_branch
      %194 = sbr.rel (%p192) target = $region37
    $region36: #{tpu_custom_call.1} parent=1 // pred_region
      %v195 = vld [vmem:[#allocation2] sm:$0xf]
      %v200 = vcombine.low %v73, %v80
      %v202 = vunpack.c.l.s4 1983009808
      %v203 = vunpack.c.0.s8 %v202
      %v204 = vlaneseq
      %v205 = vshrl.u32 %v204, 7
      %v206 = vsub.s32 %v203, %v205
      %v207 = vrot.slane %v200, %v206
      %v208 = vcombine.low %v87, %v94
      %v210 = vunpack.c.l.s4 1983009808
      %v211 = vunpack.c.0.s8 %v210
      %v212 = vlaneseq
      %v213 = vshrl.u32 %v212, 7
      %v214 = vsub.s32 %v211, %v213
      %v215 = vrot.slane %v208, %v214
      %vm216 = vcmask 1044484
      %v217 = vsel %vm216, %v207, %v207
      %vm218 = vcmask 1046534
      %v219 = vsel %vm218, %v207, %v217
      %v220 = vrot.slane %v215, 7
      %vm221 = vcmask 1041409
      %v222 = vsel %vm221, %v220, %v219
      %vm223 = vcmask 1043459
      %v224 = vsel %vm223, %v220, %v222
      %vm225 = vcmask 1045509
      %v226 = vsel %vm225, %v220, %v224
      %vm227 = vcmask 1047559
      %v228 = vsel %vm227, %v220, %v226
      %v230 = vadd.f32 %v195, %v228
      %231 = vst [vmem:[#allocation2] sm:$0xf] %v230
      %v232 = vld [vmem:[#allocation3] sm:$0xf]
      %v237 = vcombine.low %v101, %v108
      %v239 = vunpack.c.l.s4 1983009808
      %v240 = vunpack.c.0.s8 %v239
      %v241 = vlaneseq
      %v242 = vshrl.u32 %v241, 7
      %v243 = vsub.s32 %v240, %v242
      %v244 = vrot.slane %v237, %v243
      %v245 = vcombine.low %v115, %v122
      %v247 = vunpack.c.l.s4 1983009808
      %v248 = vunpack.c.0.s8 %v247
      %v249 = vlaneseq
      %v250 = vshrl.u32 %v249, 7
      %v251 = vsub.s32 %v248, %v250
      %v252 = vrot.slane %v245, %v251
      %v253 = vsel %vm216, %v244, %v244
      %v254 = vsel %vm218, %v244, %v253
      %v255 = vrot.slane %v252, 7
      %v256 = vsel %vm221, %v255, %v254
      %v257 = vsel %vm223, %v255, %v256
      %v258 = vsel %vm225, %v255, %v257
      %v259 = vsel %vm227, %v255, %v258
      %v261 = vmax.f32 %v232, %v259
      %262 = vst [vmem:[#allocation3] sm:$0xf] %v261
    $region37: #{tpu_custom_call.1} parent=1 // pred_fallthru
      _
    // Predicated region
    $region38: #{tpu_custom_call.1} parent=1 // pred_check
      %p263 = pneg %p123
    $region39: #{tpu_custom_call.1} parent=1 // pred_check_branch
      %265 = sbr.rel (%p263) target = $region41
    $region40: #{tpu_custom_call.1} parent=1 // pred_region
      %v266 = vld [vmem:[#allocation2] sm:$0xf]
      %v269 = vunpack.c.l.s4 1983009808
      %v270 = vunpack.c.0.s8 %v269
      %v271 = vlaneseq
      %v272 = vshrl.u32 %v271, 7
      %v273 = vsub.s32 %v270, %v272
      %v274 = vrot.slane %v266, %v273
      %v275 = vcombine.high %v274, %v274
      %276 = vrot.lane.b32.xlu0 %v274, 51
      %v277 = vpop.permute.xlu0 %276
      %278 = vrot.lane.b32.xlu0 %v275, 51
      %v279 = vpop.permute.xlu0 %278
      %vm280 = vcmask 416768
      %v281 = vsel %vm280, %v277, %v279
      %v285 = vsel %vm280, 0.0, %v277
      %v286 = vsel %vm280, %v279, 0.0
      %s287 = sld [smem:[#allocation5]]
      %v288 = vstv %s287
      %v289 = vmul.f32 %v288, %v285
      %v290 = vmul.f32 %v288, %v281
      %s291 = sld [smem:[#allocation5 + $0x7]]
      %v292 = vstv %s291
      %v293 = vmul.f32 %v292, %v285
      %v294 = vmul.f32 %v292, %v281
      %v295 = vmul.f32 %v292, %v286
      %s296 = sld [smem:[#allocation5 + $0xe]]
      %v297 = vstv %s296
      %v298 = vmul.f32 %v297, %v285
      %v299 = vmul.f32 %v297, %v281
      %v300 = vmul.f32 %v297, %v286
      %304 = vrot.lane.b32.xlu0 %v298, 96
      %v305 = vpop.permute.xlu0 %304
      %306 = vrot.lane.b32.xlu0 %v299, 96
      %v307 = vpop.permute.xlu0 %306
      %308 = vrot.lane.b32.xlu0 %v300, 96
      %v309 = vpop.permute.xlu0 %308
      %vm310 = vcmask 785408
      %v311 = vsel %vm310, %v305, %v307
      %v312 = vsel %vm310, %v307, %v309
      %v315 = vadd.f32 %v289, %v311
      %v316 = vadd.f32 %v290, %v312
      %s317 = sld [smem:[#allocation5 + $0x15]]
      %v318 = vstv %s317
      %v319 = vmul.f32 %v318, %v285
      %v320 = vmul.f32 %v318, %v281
      %v321 = vmul.f32 %v318, %v286
      %325 = vrot.lane.b32.xlu0 %v319, 96
      %v326 = vpop.permute.xlu0 %325
      %327 = vrot.lane.b32.xlu0 %v320, 96
      %v328 = vpop.permute.xlu0 %327
      %329 = vrot.lane.b32.xlu0 %v321, 96
      %v330 = vpop.permute.xlu0 %329
      %v331 = vsel %vm310, %v326, %v328
      %v332 = vsel %vm310, %v328, %v330
      %v336 = vadd.f32 %v293, %v331
      %v337 = vadd.f32 %v294, %v332
      %v338 = vadd.f32 %v295, %v330
      %s339 = sld [smem:[#allocation5 + $0x1c]]
      %v340 = vstv %s339
      %v341 = vmul.f32 %v340, %v285
      %v342 = vmul.f32 %v340, %v281
      %v343 = vmul.f32 %v340, %v286
      %347 = vrot.lane.b32.xlu0 %v341, 64
      %v348 = vpop.permute.xlu0 %347
      %349 = vrot.lane.b32.xlu0 %v342, 64
      %v350 = vpop.permute.xlu0 %349
      %351 = vrot.lane.b32.xlu0 %v343, 64
      %v352 = vpop.permute.xlu0 %351
      %vm353 = vcmask 523264
      %v354 = vsel %vm353, %v348, %v350
      %v355 = vsel %vm353, %v350, %v352
      %v358 = vadd.f32 %v315, %v354
      %v359 = vadd.f32 %v316, %v355
      %s360 = sld [smem:[#allocation5 + $0x23]]
      %v361 = vstv %s360
      %v362 = vmul.f32 %v361, %v285
      %v363 = vmul.f32 %v361, %v281
      %v364 = vmul.f32 %v361, %v286
      %368 = vrot.lane.b32.xlu0 %v362, 64
      %v369 = vpop.permute.xlu0 %368
      %370 = vrot.lane.b32.xlu0 %v363, 64
      %v371 = vpop.permute.xlu0 %370
      %372 = vrot.lane.b32.xlu0 %v364, 64
      %v373 = vpop.permute.xlu0 %372
      %v374 = vsel %vm353, %v369, %v371
      %v375 = vsel %vm353, %v371, %v373
      %v379 = vadd.f32 %v336, %v374
      %v380 = vadd.f32 %v337, %v375
      %v381 = vadd.f32 %v338, %v373
      %s382 = sld [smem:[#allocation5 + $0x2a]]
      %v383 = vstv %s382
      %v384 = vmul.f32 %v383, %v285
      %v385 = vmul.f32 %v383, %v281
      %v386 = vmul.f32 %v383, %v286
      %390 = vrot.lane.b32.xlu0 %v384, 32
      %v391 = vpop.permute.xlu0 %390
      %392 = vrot.lane.b32.xlu0 %v385, 32
      %v393 = vpop.permute.xlu0 %392
      %394 = vrot.lane.b32.xlu0 %v386, 32
      %v395 = vpop.permute.xlu0 %394
      %vm396 = vcmask 261120
      %v397 = vsel %vm396, %v391, %v393
      %v398 = vsel %vm396, %v393, %v395
      %v401 = vadd.f32 %v358, %v397
      %v402 = vadd.f32 %v359, %v398
      %v403 = vld [vmem:[#allocation9] ss:$8 sm:$0x3]
      %407 = vrot.lane.b32.xlu0 %v379, 112
      %v408 = vpop.permute.xlu0 %407
      %409 = vrot.lane.b32.xlu0 %v380, 112
      %v410 = vpop.permute.xlu0 %409
      %411 = vrot.lane.b32.xlu0 %v381, 112
      %v412 = vpop.permute.xlu0 %411
      %vm413 = vcmask 916480
      %v414 = vsel %vm413, %v408, %v410
      %v415 = vsel %vm413, %v410, %v412
      %v418 = vadd.f32 %v401, %v414
      %v419 = vadd.f32 %v402, %v415
      %v421 = vlaneseq
      %v422 = vshrl.u32 %v421, 7
      %v423 = vsub.s32 0, %v422
      %v424 = vrot.slane %v403, %v423
      %v425 = vlaneseq
      %v426 = vshrl.u32 %v425, 7
      %v427 = vsub.s32 1, %v426
      %v428 = vrot.slane %v403, %v427
      %v431 = vmul.f32 %v424, %v418
      %v432 = vmul.f32 %v428, %v419
      %s433 = sld [smem:[#allocation5 + $0x1]]
      %v434 = vstv %s433
      %v435 = vmul.f32 %v434, %v285
      %v436 = vmul.f32 %v434, %v281
      %v437 = vmul.f32 %v434, %v286
      %s438 = sld [smem:[#allocation5 + $0x8]]
      %v439 = vstv %s438
      %v440 = vmul.f32 %v439, %v285
      %v441 = vmul.f32 %v439, %v281
      %v442 = vmul.f32 %v439, %v286
      %s443 = sld [smem:[#allocation5 + $0xf]]
      %v444 = vstv %s443
      %v445 = vmul.f32 %v444, %v285
      %v446 = vmul.f32 %v444, %v281
      %v447 = vmul.f32 %v444, %v286
      %451 = vrot.lane.b32.xlu0 %v445, 96
      %v452 = vpop.permute.xlu0 %451
      %453 = vrot.lane.b32.xlu0 %v446, 96
      %v454 = vpop.permute.xlu0 %453
      %455 = vrot.lane.b32.xlu0 %v447, 96
      %v456 = vpop.permute.xlu0 %455
      %v457 = vsel %vm310, %v452, %v454
      %v458 = vsel %vm310, %v454, %v456
      %v462 = vadd.f32 %v435, %v457
      %v463 = vadd.f32 %v436, %v458
      %v464 = vadd.f32 %v437, %v456
      %s465 = sld [smem:[#allocation5 + $0x16]]
      %v466 = vstv %s465
      %v467 = vmul.f32 %v466, %v285
      %v468 = vmul.f32 %v466, %v281
      %v469 = vmul.f32 %v466, %v286
      %473 = vrot.lane.b32.xlu0 %v467, 96
      %v474 = vpop.permute.xlu0 %473
      %475 = vrot.lane.b32.xlu0 %v468, 96
      %v476 = vpop.permute.xlu0 %475
      %477 = vrot.lane.b32.xlu0 %v469, 96
      %v478 = vpop.permute.xlu0 %477
      %v479 = vsel %vm310, %v474, %v476
      %v480 = vsel %vm310, %v476, %v478
      %v484 = vadd.f32 %v440, %v479
      %v485 = vadd.f32 %v441, %v480
      %v486 = vadd.f32 %v442, %v478
      %s487 = sld [smem:[#allocation5 + $0x1d]]
      %v488 = vstv %s487
      %v489 = vmul.f32 %v488, %v285
      %v490 = vmul.f32 %v488, %v281
      %v491 = vmul.f32 %v488, %v286
      %495 = vrot.lane.b32.xlu0 %v489, 64
      %v496 = vpop.permute.xlu0 %495
      %497 = vrot.lane.b32.xlu0 %v490, 64
      %v498 = vpop.permute.xlu0 %497
      %499 = vrot.lane.b32.xlu0 %v491, 64
      %v500 = vpop.permute.xlu0 %499
      %v501 = vsel %vm353, %v496, %v498
      %v502 = vsel %vm353, %v498, %v500
      %v506 = vadd.f32 %v462, %v501
      %v507 = vadd.f32 %v463, %v502
      %v508 = vadd.f32 %v464, %v500
      %s509 = sld [smem:[#allocation5 + $0x24]]
      %v510 = vstv %s509
      %v511 = vmul.f32 %v510, %v285
      %v512 = vmul.f32 %v510, %v281
      %v513 = vmul.f32 %v510, %v286
      %517 = vrot.lane.b32.xlu0 %v511, 64
      %v518 = vpop.permute.xlu0 %517
      %519 = vrot.lane.b32.xlu0 %v512, 64
      %v520 = vpop.permute.xlu0 %519
      %521 = vrot.lane.b32.xlu0 %v513, 64
      %v522 = vpop.permute.xlu0 %521
      %v523 = vsel %vm353, %v518, %v520
      %v524 = vsel %vm353, %v520, %v522
      %v528 = vadd.f32 %v484, %v523
      %v529 = vadd.f32 %v485, %v524
      %v530 = vadd.f32 %v486, %v522
      %s531 = sld [smem:[#allocation5 + $0x2b]]
      %v532 = vstv %s531
      %v533 = vmul.f32 %v532, %v285
      %v534 = vmul.f32 %v532, %v281
      %v535 = vmul.f32 %v532, %v286
      %539 = vrot.lane.b32.xlu0 %v533, 32
      %v540 = vpop.permute.xlu0 %539
      %541 = vrot.lane.b32.xlu0 %v534, 32
      %v542 = vpop.permute.xlu0 %541
      %543 = vrot.lane.b32.xlu0 %v535, 32
      %v544 = vpop.permute.xlu0 %543
      %v545 = vsel %vm396, %v540, %v542
      %v546 = vsel %vm396, %v542, %v544
      %v550 = vadd.f32 %v506, %v545
      %v551 = vadd.f32 %v507, %v546
      %v552 = vadd.f32 %v508, %v544
      %s553 = scalar_lea.vmem [#allocation9], 1
      %v554 = vld [vmem:[%s553] ss:$8 sm:$0x3]
      %558 = vrot.lane.b32.xlu0 %v528, 112
      %v559 = vpop.permute.xlu0 %558
      %560 = vrot.lane.b32.xlu0 %v529, 112
      %v561 = vpop.permute.xlu0 %560
      %562 = vrot.lane.b32.xlu0 %v530, 112
      %v563 = vpop.permute.xlu0 %562
      %v564 = vsel %vm413, %v559, %v561
      %v565 = vsel %vm413, %v561, %v563
      %v569 = vadd.f32 %v550, %v564
      %v570 = vadd.f32 %v551, %v565
      %v571 = vadd.f32 %v552, %v563
      %v573 = vlaneseq
      %v574 = vshrl.u32 %v573, 7
      %v575 = vsub.s32 0, %v574
      %v576 = vrot.slane %v554, %v575
      %v577 = vlaneseq
      %v578 = vshrl.u32 %v577, 7
      %v579 = vsub.s32 1, %v578
      %v580 = vrot.slane %v554, %v579
      %586 = vrot.lane.b32.xlu0 %v569, 127
      %v587 = vpop.permute.xlu0 %586
      %588 = vrot.lane.b32.xlu0 %v570, 127
      %v589 = vpop.permute.xlu0 %588
      %590 = vrot.lane.b32.xlu0 %v571, 127
      %v591 = vpop.permute.xlu0 %590
      %vm592 = vcmask 1039360
      %v593 = vsel %vm592, %v587, %v589
      %v594 = vsel %vm592, %v589, %v591
      %v597 = vmul.f32 %v576, %v593
      %v598 = vmul.f32 %v580, %v594
      %v599 = vadd.f32 %v431, %v597
      %v600 = vadd.f32 %v432, %v598
      %s601 = sld [smem:[#allocation5 + $0x2]]
      %v602 = vstv %s601
      %v603 = vmul.f32 %v602, %v285
      %v604 = vmul.f32 %v602, %v281
      %v605 = vmul.f32 %v602, %v286
      %s606 = sld [smem:[#allocation5 + $0x9]]
      %v607 = vstv %s606
      %v608 = vmul.f32 %v607, %v285
      %v609 = vmul.f32 %v607, %v281
      %v610 = vmul.f32 %v607, %v286
      %s611 = sld [smem:[#allocation5 + $0x10]]
      %v612 = vstv %s611
      %v613 = vmul.f32 %v612, %v285
      %v614 = vmul.f32 %v612, %v281
      %v615 = vmul.f32 %v612, %v286
      %619 = vrot.lane.b32.xlu0 %v613, 96
      %v620 = vpop.permute.xlu0 %619
      %621 = vrot.lane.b32.xlu0 %v614, 96
      %v622 = vpop.permute.xlu0 %621
      %623 = vrot.lane.b32.xlu0 %v615, 96
      %v624 = vpop.permute.xlu0 %623
      %v625 = vsel %vm310, %v620, %v622
      %v626 = vsel %vm310, %v622, %v624
      %v630 = vadd.f32 %v603, %v625
      %v631 = vadd.f32 %v604, %v626
      %v632 = vadd.f32 %v605, %v624
      %s633 = sld [smem:[#allocation5 + $0x17]]
      %v634 = vstv %s633
      %v635 = vmul.f32 %v634, %v285
      %v636 = vmul.f32 %v634, %v281
      %v637 = vmul.f32 %v634, %v286
      %641 = vrot.lane.b32.xlu0 %v635, 96
      %v642 = vpop.permute.xlu0 %641
      %643 = vrot.lane.b32.xlu0 %v636, 96
      %v644 = vpop.permute.xlu0 %643
      %645 = vrot.lane.b32.xlu0 %v637, 96
      %v646 = vpop.permute.xlu0 %645
      %v647 = vsel %vm310, %v642, %v644
      %v648 = vsel %vm310, %v644, %v646
      %v652 = vadd.f32 %v608, %v647
      %v653 = vadd.f32 %v609, %v648
      %v654 = vadd.f32 %v610, %v646
      %s655 = sld [smem:[#allocation5 + $0x1e]]
      %v656 = vstv %s655
      %v657 = vmul.f32 %v656, %v285
      %v658 = vmul.f32 %v656, %v281
      %v659 = vmul.f32 %v656, %v286
      %663 = vrot.lane.b32.xlu0 %v657, 64
      %v664 = vpop.permute.xlu0 %663
      %665 = vrot.lane.b32.xlu0 %v658, 64
      %v666 = vpop.permute.xlu0 %665
      %667 = vrot.lane.b32.xlu0 %v659, 64
      %v668 = vpop.permute.xlu0 %667
      %v669 = vsel %vm353, %v664, %v666
      %v670 = vsel %vm353, %v666, %v668
      %v674 = vadd.f32 %v630, %v669
      %v675 = vadd.f32 %v631, %v670
      %v676 = vadd.f32 %v632, %v668
      %s677 = sld [smem:[#allocation5 + $0x25]]
      %v678 = vstv %s677
      %v679 = vmul.f32 %v678, %v285
      %v680 = vmul.f32 %v678, %v281
      %v681 = vmul.f32 %v678, %v286
      %685 = vrot.lane.b32.xlu0 %v679, 64
      %v686 = vpop.permute.xlu0 %685
      %687 = vrot.lane.b32.xlu0 %v680, 64
      %v688 = vpop.permute.xlu0 %687
      %689 = vrot.lane.b32.xlu0 %v681, 64
      %v690 = vpop.permute.xlu0 %689
      %v691 = vsel %vm353, %v686, %v688
      %v692 = vsel %vm353, %v688, %v690
      %v696 = vadd.f32 %v652, %v691
      %v697 = vadd.f32 %v653, %v692
      %v698 = vadd.f32 %v654, %v690
      %s699 = sld [smem:[#allocation5 + $0x2c]]
      %v700 = vstv %s699
      %v701 = vmul.f32 %v700, %v285
      %v702 = vmul.f32 %v700, %v281
      %v703 = vmul.f32 %v700, %v286
      %707 = vrot.lane.b32.xlu0 %v701, 32
      %v708 = vpop.permute.xlu0 %707
      %709 = vrot.lane.b32.xlu0 %v702, 32
      %v710 = vpop.permute.xlu0 %709
      %711 = vrot.lane.b32.xlu0 %v703, 32
      %v712 = vpop.permute.xlu0 %711
      %v713 = vsel %vm396, %v708, %v710
      %v714 = vsel %vm396, %v710, %v712
      %v718 = vadd.f32 %v674, %v713
      %v719 = vadd.f32 %v675, %v714
      %v720 = vadd.f32 %v676, %v712
      %s721 = scalar_lea.vmem [#allocation9], 2
      %v722 = vld [vmem:[%s721] ss:$8 sm:$0x3]
      %726 = vrot.lane.b32.xlu0 %v696, 112
      %v727 = vpop.permute.xlu0 %726
      %728 = vrot.lane.b32.xlu0 %v697, 112
      %v729 = vpop.permute.xlu0 %728
      %730 = vrot.lane.b32.xlu0 %v698, 112
      %v731 = vpop.permute.xlu0 %730
      %v732 = vsel %vm413, %v727, %v729
      %v733 = vsel %vm413, %v729, %v731
      %v737 = vadd.f32 %v718, %v732
      %v738 = vadd.f32 %v719, %v733
      %v739 = vadd.f32 %v720, %v731
      %v741 = vlaneseq
      %v742 = vshrl.u32 %v741, 7
      %v743 = vsub.s32 0, %v742
      %v744 = vrot.slane %v722, %v743
      %v745 = vlaneseq
      %v746 = vshrl.u32 %v745, 7
      %v747 = vsub.s32 1, %v746
      %v748 = vrot.slane %v722, %v747
      %754 = vrot.lane.b32.xlu0 %v737, 126
      %v755 = vpop.permute.xlu0 %754
      %756 = vrot.lane.b32.xlu0 %v738, 126
      %v757 = vpop.permute.xlu0 %756
      %758 = vrot.lane.b32.xlu0 %v739, 126
      %v759 = vpop.permute.xlu0 %758
      %vm760 = vcmask 1031168
      %v761 = vsel %vm760, %v755, %v757
      %v762 = vsel %vm760, %v757, %v759
      %v765 = vmul.f32 %v744, %v761
      %v766 = vmul.f32 %v748, %v762
      %v767 = vadd.f32 %v599, %v765
      %v768 = vadd.f32 %v600, %v766
      %s769 = sld [smem:[#allocation5 + $0x3]]
      %v770 = vstv %s769
      %v771 = vmul.f32 %v770, %v285
      %v772 = vmul.f32 %v770, %v281
      %v773 = vmul.f32 %v770, %v286
      %s774 = sld [smem:[#allocation5 + $0xa]]
      %v775 = vstv %s774
      %v776 = vmul.f32 %v775, %v285
      %v777 = vmul.f32 %v775, %v281
      %v778 = vmul.f32 %v775, %v286
      %s779 = sld [smem:[#allocation5 + $0x11]]
      %v780 = vstv %s779
      %v781 = vmul.f32 %v780, %v285
      %v782 = vmul.f32 %v780, %v281
      %v783 = vmul.f32 %v780, %v286
      %787 = vrot.lane.b32.xlu0 %v781, 96
      %v788 = vpop.permute.xlu0 %787
      %789 = vrot.lane.b32.xlu0 %v782, 96
      %v790 = vpop.permute.xlu0 %789
      %791 = vrot.lane.b32.xlu0 %v783, 96
      %v792 = vpop.permute.xlu0 %791
      %v793 = vsel %vm310, %v788, %v790
      %v794 = vsel %vm310, %v790, %v792
      %v798 = vadd.f32 %v771, %v793
      %v799 = vadd.f32 %v772, %v794
      %v800 = vadd.f32 %v773, %v792
      %s801 = sld [smem:[#allocation5 + $0x18]]
      %v802 = vstv %s801
      %v803 = vmul.f32 %v802, %v285
      %v804 = vmul.f32 %v802, %v281
      %v805 = vmul.f32 %v802, %v286
      %809 = vrot.lane.b32.xlu0 %v803, 96
      %v810 = vpop.permute.xlu0 %809
      %811 = vrot.lane.b32.xlu0 %v804, 96
      %v812 = vpop.permute.xlu0 %811
      %813 = vrot.lane.b32.xlu0 %v805, 96
      %v814 = vpop.permute.xlu0 %813
      %v815 = vsel %vm310, %v810, %v812
      %v816 = vsel %vm310, %v812, %v814
      %v820 = vadd.f32 %v776, %v815
      %v821 = vadd.f32 %v777, %v816
      %v822 = vadd.f32 %v778, %v814
      %s823 = sld [smem:[#allocation5 + $0x1f]]
      %v824 = vstv %s823
      %v825 = vmul.f32 %v824, %v285
      %v826 = vmul.f32 %v824, %v281
      %v827 = vmul.f32 %v824, %v286
      %831 = vrot.lane.b32.xlu0 %v825, 64
      %v832 = vpop.permute.xlu0 %831
      %833 = vrot.lane.b32.xlu0 %v826, 64
      %v834 = vpop.permute.xlu0 %833
      %835 = vrot.lane.b32.xlu0 %v827, 64
      %v836 = vpop.permute.xlu0 %835
      %v837 = vsel %vm353, %v832, %v834
      %v838 = vsel %vm353, %v834, %v836
      %v842 = vadd.f32 %v798, %v837
      %v843 = vadd.f32 %v799, %v838
      %v844 = vadd.f32 %v800, %v836
      %s845 = sld [smem:[#allocation5 + $0x26]]
      %v846 = vstv %s845
      %v847 = vmul.f32 %v846, %v285
      %v848 = vmul.f32 %v846, %v281
      %v849 = vmul.f32 %v846, %v286
      %853 = vrot.lane.b32.xlu0 %v847, 64
      %v854 = vpop.permute.xlu0 %853
      %855 = vrot.lane.b32.xlu0 %v848, 64
      %v856 = vpop.permute.xlu0 %855
      %857 = vrot.lane.b32.xlu0 %v849, 64
      %v858 = vpop.permute.xlu0 %857
      %v859 = vsel %vm353, %v854, %v856
      %v860 = vsel %vm353, %v856, %v858
      %v864 = vadd.f32 %v820, %v859
      %v865 = vadd.f32 %v821, %v860
      %v866 = vadd.f32 %v822, %v858
      %s867 = sld [smem:[#allocation5 + $0x2d]]
      %v868 = vstv %s867
      %v869 = vmul.f32 %v868, %v285
      %v870 = vmul.f32 %v868, %v281
      %v871 = vmul.f32 %v868, %v286
      %875 = vrot.lane.b32.xlu0 %v869, 32
      %v876 = vpop.permute.xlu0 %875
      %877 = vrot.lane.b32.xlu0 %v870, 32
      %v878 = vpop.permute.xlu0 %877
      %879 = vrot.lane.b32.xlu0 %v871, 32
      %v880 = vpop.permute.xlu0 %879
      %v881 = vsel %vm396, %v876, %v878
      %v882 = vsel %vm396, %v878, %v880
      %v886 = vadd.f32 %v842, %v881
      %v887 = vadd.f32 %v843, %v882
      %v888 = vadd.f32 %v844, %v880
      %s889 = scalar_lea.vmem [#allocation9], 3
      %v890 = vld [vmem:[%s889] ss:$8 sm:$0x3]
      %894 = vrot.lane.b32.xlu0 %v864, 112
      %v895 = vpop.permute.xlu0 %894
      %896 = vrot.lane.b32.xlu0 %v865, 112
      %v897 = vpop.permute.xlu0 %896
      %898 = vrot.lane.b32.xlu0 %v866, 112
      %v899 = vpop.permute.xlu0 %898
      %v900 = vsel %vm413, %v895, %v897
      %v901 = vsel %vm413, %v897, %v899
      %v905 = vadd.f32 %v886, %v900
      %v906 = vadd.f32 %v887, %v901
      %v907 = vadd.f32 %v888, %v899
      %v909 = vlaneseq
      %v910 = vshrl.u32 %v909, 7
      %v911 = vsub.s32 0, %v910
      %v912 = vrot.slane %v890, %v911
      %v913 = vlaneseq
      %v914 = vshrl.u32 %v913, 7
      %v915 = vsub.s32 1, %v914
      %v916 = vrot.slane %v890, %v915
      %922 = vrot.lane.b32.xlu0 %v905, 125
      %v923 = vpop.permute.xlu0 %922
      %924 = vrot.lane.b32.xlu0 %v906, 125
      %v925 = vpop.permute.xlu0 %924
      %926 = vrot.lane.b32.xlu0 %v907, 125
      %v927 = vpop.permute.xlu0 %926
      %vm928 = vcmask 1022976
      %v929 = vsel %vm928, %v923, %v925
      %v930 = vsel %vm928, %v925, %v927
      %v933 = vmul.f32 %v912, %v929
      %v934 = vmul.f32 %v916, %v930
      %v935 = vadd.f32 %v767, %v933
      %v936 = vadd.f32 %v768, %v934
      %s937 = sld [smem:[#allocation5 + $0x4]]
      %v938 = vstv %s937
      %v939 = vmul.f32 %v938, %v285
      %v940 = vmul.f32 %v938, %v281
      %v941 = vmul.f32 %v938, %v286
      %s942 = sld [smem:[#allocation5 + $0xb]]
      %v943 = vstv %s942
      %v944 = vmul.f32 %v943, %v285
      %v945 = vmul.f32 %v943, %v281
      %v946 = vmul.f32 %v943, %v286
      %s947 = sld [smem:[#allocation5 + $0x12]]
      %v948 = vstv %s947
      %v949 = vmul.f32 %v948, %v285
      %v950 = vmul.f32 %v948, %v281
      %v951 = vmul.f32 %v948, %v286
      %955 = vrot.lane.b32.xlu0 %v949, 96
      %v956 = vpop.permute.xlu0 %955
      %957 = vrot.lane.b32.xlu0 %v950, 96
      %v958 = vpop.permute.xlu0 %957
      %959 = vrot.lane.b32.xlu0 %v951, 96
      %v960 = vpop.permute.xlu0 %959
      %v961 = vsel %vm310, %v956, %v958
      %v962 = vsel %vm310, %v958, %v960
      %v966 = vadd.f32 %v939, %v961
      %v967 = vadd.f32 %v940, %v962
      %v968 = vadd.f32 %v941, %v960
      %s969 = sld [smem:[#allocation5 + $0x19]]
      %v970 = vstv %s969
      %v971 = vmul.f32 %v970, %v285
      %v972 = vmul.f32 %v970, %v281
      %v973 = vmul.f32 %v970, %v286
      %977 = vrot.lane.b32.xlu0 %v971, 96
      %v978 = vpop.permute.xlu0 %977
      %979 = vrot.lane.b32.xlu0 %v972, 96
      %v980 = vpop.permute.xlu0 %979
      %981 = vrot.lane.b32.xlu0 %v973, 96
      %v982 = vpop.permute.xlu0 %981
      %v983 = vsel %vm310, %v978, %v980
      %v984 = vsel %vm310, %v980, %v982
      %v988 = vadd.f32 %v944, %v983
      %v989 = vadd.f32 %v945, %v984
      %v990 = vadd.f32 %v946, %v982
      %s991 = sld [smem:[#allocation5 + $0x20]]
      %v992 = vstv %s991
      %v993 = vmul.f32 %v992, %v285
      %v994 = vmul.f32 %v992, %v281
      %v995 = vmul.f32 %v992, %v286
      %999 = vrot.lane.b32.xlu0 %v993, 64
      %v1000 = vpop.permute.xlu0 %999
      %1001 = vrot.lane.b32.xlu0 %v994, 64
      %v1002 = vpop.permute.xlu0 %1001
      %1003 = vrot.lane.b32.xlu0 %v995, 64
      %v1004 = vpop.permute.xlu0 %1003
      %v1005 = vsel %vm353, %v1000, %v1002
      %v1006 = vsel %vm353, %v1002, %v1004
      %v1010 = vadd.f32 %v966, %v1005
      %v1011 = vadd.f32 %v967, %v1006
      %v1012 = vadd.f32 %v968, %v1004
      %s1013 = sld [smem:[#allocation5 + $0x27]]
      %v1014 = vstv %s1013
      %v1015 = vmul.f32 %v1014, %v285
      %v1016 = vmul.f32 %v1014, %v281
      %v1017 = vmul.f32 %v1014, %v286
      %1021 = vrot.lane.b32.xlu0 %v1015, 64
      %v1022 = vpop.permute.xlu0 %1021
      %1023 = vrot.lane.b32.xlu0 %v1016, 64
      %v1024 = vpop.permute.xlu0 %1023
      %1025 = vrot.lane.b32.xlu0 %v1017, 64
      %v1026 = vpop.permute.xlu0 %1025
      %v1027 = vsel %vm353, %v1022, %v1024
      %v1028 = vsel %vm353, %v1024, %v1026
      %v1032 = vadd.f32 %v988, %v1027
      %v1033 = vadd.f32 %v989, %v1028
      %v1034 = vadd.f32 %v990, %v1026
      %s1035 = sld [smem:[#allocation5 + $0x2e]]
      %v1036 = vstv %s1035
      %v1037 = vmul.f32 %v1036, %v285
      %v1038 = vmul.f32 %v1036, %v281
      %v1039 = vmul.f32 %v1036, %v286
      %1043 = vrot.lane.b32.xlu0 %v1037, 32
      %v1044 = vpop.permute.xlu0 %1043
      %1045 = vrot.lane.b32.xlu0 %v1038, 32
      %v1046 = vpop.permute.xlu0 %1045
      %1047 = vrot.lane.b32.xlu0 %v1039, 32
      %v1048 = vpop.permute.xlu0 %1047
      %v1049 = vsel %vm396, %v1044, %v1046
      %v1050 = vsel %vm396, %v1046, %v1048
      %v1054 = vadd.f32 %v1010, %v1049
      %v1055 = vadd.f32 %v1011, %v1050
      %v1056 = vadd.f32 %v1012, %v1048
      %s1057 = scalar_lea.vmem [#allocation9], 4
      %v1058 = vld [vmem:[%s1057] ss:$8 sm:$0x3]
      %1062 = vrot.lane.b32.xlu0 %v1032, 112
      %v1063 = vpop.permute.xlu0 %1062
      %1064 = vrot.lane.b32.xlu0 %v1033, 112
      %v1065 = vpop.permute.xlu0 %1064
      %1066 = vrot.lane.b32.xlu0 %v1034, 112
      %v1067 = vpop.permute.xlu0 %1066
      %v1068 = vsel %vm413, %v1063, %v1065
      %v1069 = vsel %vm413, %v1065, %v1067
      %v1073 = vadd.f32 %v1054, %v1068
      %v1074 = vadd.f32 %v1055, %v1069
      %v1075 = vadd.f32 %v1056, %v1067
      %v1077 = vlaneseq
      %v1078 = vshrl.u32 %v1077, 7
      %v1079 = vsub.s32 0, %v1078
      %v1080 = vrot.slane %v1058, %v1079
      %v1081 = vlaneseq
      %v1082 = vshrl.u32 %v1081, 7
      %v1083 = vsub.s32 1, %v1082
      %v1084 = vrot.slane %v1058, %v1083
      %1090 = vrot.lane.b32.xlu0 %v1073, 124
      %v1091 = vpop.permute.xlu0 %1090
      %1092 = vrot.lane.b32.xlu0 %v1074, 124
      %v1093 = vpop.permute.xlu0 %1092
      %1094 = vrot.lane.b32.xlu0 %v1075, 124
      %v1095 = vpop.permute.xlu0 %1094
      %vm1096 = vcmask 1014784
      %v1097 = vsel %vm1096, %v1091, %v1093
      %v1098 = vsel %vm1096, %v1093, %v1095
      %v1101 = vmul.f32 %v1080, %v1097
      %v1102 = vmul.f32 %v1084, %v1098
      %v1103 = vadd.f32 %v935, %v1101
      %v1104 = vadd.f32 %v936, %v1102
      %s1105 = sld [smem:[#allocation5 + $0x5]]
      %v1106 = vstv %s1105
      %v1107 = vmul.f32 %v1106, %v285
      %v1108 = vmul.f32 %v1106, %v281
      %v1109 = vmul.f32 %v1106, %v286
      %s1110 = sld [smem:[#allocation5 + $0xc]]
      %v1111 = vstv %s1110
      %v1112 = vmul.f32 %v1111, %v285
      %v1113 = vmul.f32 %v1111, %v281
      %v1114 = vmul.f32 %v1111, %v286
      %s1115 = sld [smem:[#allocation5 + $0x13]]
      %v1116 = vstv %s1115
      %v1117 = vmul.f32 %v1116, %v285
      %v1118 = vmul.f32 %v1116, %v281
      %v1119 = vmul.f32 %v1116, %v286
      %1123 = vrot.lane.b32.xlu0 %v1117, 96
      %v1124 = vpop.permute.xlu0 %1123
      %1125 = vrot.lane.b32.xlu0 %v1118, 96
      %v1126 = vpop.permute.xlu0 %1125
      %1127 = vrot.lane.b32.xlu0 %v1119, 96
      %v1128 = vpop.permute.xlu0 %1127
      %v1129 = vsel %vm310, %v1124, %v1126
      %v1130 = vsel %vm310, %v1126, %v1128
      %v1134 = vadd.f32 %v1107, %v1129
      %v1135 = vadd.f32 %v1108, %v1130
      %v1136 = vadd.f32 %v1109, %v1128
      %s1137 = sld [smem:[#allocation5 + $0x1a]]
      %v1138 = vstv %s1137
      %v1139 = vmul.f32 %v1138, %v285
      %v1140 = vmul.f32 %v1138, %v281
      %v1141 = vmul.f32 %v1138, %v286
      %1145 = vrot.lane.b32.xlu0 %v1139, 96
      %v1146 = vpop.permute.xlu0 %1145
      %1147 = vrot.lane.b32.xlu0 %v1140, 96
      %v1148 = vpop.permute.xlu0 %1147
      %1149 = vrot.lane.b32.xlu0 %v1141, 96
      %v1150 = vpop.permute.xlu0 %1149
      %v1151 = vsel %vm310, %v1146, %v1148
      %v1152 = vsel %vm310, %v1148, %v1150
      %v1156 = vadd.f32 %v1112, %v1151
      %v1157 = vadd.f32 %v1113, %v1152
      %v1158 = vadd.f32 %v1114, %v1150
      %s1159 = sld [smem:[#allocation5 + $0x21]]
      %v1160 = vstv %s1159
      %v1161 = vmul.f32 %v1160, %v285
      %v1162 = vmul.f32 %v1160, %v281
      %v1163 = vmul.f32 %v1160, %v286
      %1167 = vrot.lane.b32.xlu0 %v1161, 64
      %v1168 = vpop.permute.xlu0 %1167
      %1169 = vrot.lane.b32.xlu0 %v1162, 64
      %v1170 = vpop.permute.xlu0 %1169
      %1171 = vrot.lane.b32.xlu0 %v1163, 64
      %v1172 = vpop.permute.xlu0 %1171
      %v1173 = vsel %vm353, %v1168, %v1170
      %v1174 = vsel %vm353, %v1170, %v1172
      %v1178 = vadd.f32 %v1134, %v1173
      %v1179 = vadd.f32 %v1135, %v1174
      %v1180 = vadd.f32 %v1136, %v1172
      %s1181 = sld [smem:[#allocation5 + $0x28]]
      %v1182 = vstv %s1181
      %v1183 = vmul.f32 %v1182, %v285
      %v1184 = vmul.f32 %v1182, %v281
      %v1185 = vmul.f32 %v1182, %v286
      %1189 = vrot.lane.b32.xlu0 %v1183, 64
      %v1190 = vpop.permute.xlu0 %1189
      %1191 = vrot.lane.b32.xlu0 %v1184, 64
      %v1192 = vpop.permute.xlu0 %1191
      %1193 = vrot.lane.b32.xlu0 %v1185, 64
      %v1194 = vpop.permute.xlu0 %1193
      %v1195 = vsel %vm353, %v1190, %v1192
      %v1196 = vsel %vm353, %v1192, %v1194
      %v1200 = vadd.f32 %v1156, %v1195
      %v1201 = vadd.f32 %v1157, %v1196
      %v1202 = vadd.f32 %v1158, %v1194
      %s1203 = sld [smem:[#allocation5 + $0x2f]]
      %v1204 = vstv %s1203
      %v1205 = vmul.f32 %v1204, %v285
      %v1206 = vmul.f32 %v1204, %v281
      %v1207 = vmul.f32 %v1204, %v286
      %1211 = vrot.lane.b32.xlu0 %v1205, 32
      %v1212 = vpop.permute.xlu0 %1211
      %1213 = vrot.lane.b32.xlu0 %v1206, 32
      %v1214 = vpop.permute.xlu0 %1213
      %1215 = vrot.lane.b32.xlu0 %v1207, 32
      %v1216 = vpop.permute.xlu0 %1215
      %v1217 = vsel %vm396, %v1212, %v1214
      %v1218 = vsel %vm396, %v1214, %v1216
      %v1222 = vadd.f32 %v1178, %v1217
      %v1223 = vadd.f32 %v1179, %v1218
      %v1224 = vadd.f32 %v1180, %v1216
      %s1225 = scalar_lea.vmem [#allocation9], 5
      %v1226 = vld [vmem:[%s1225] ss:$8 sm:$0x3]
      %1230 = vrot.lane.b32.xlu0 %v1200, 112
      %v1231 = vpop.permute.xlu0 %1230
      %1232 = vrot.lane.b32.xlu0 %v1201, 112
      %v1233 = vpop.permute.xlu0 %1232
      %1234 = vrot.lane.b32.xlu0 %v1202, 112
      %v1235 = vpop.permute.xlu0 %1234
      %v1236 = vsel %vm413, %v1231, %v1233
      %v1237 = vsel %vm413, %v1233, %v1235
      %v1241 = vadd.f32 %v1222, %v1236
      %v1242 = vadd.f32 %v1223, %v1237
      %v1243 = vadd.f32 %v1224, %v1235
      %v1245 = vlaneseq
      %v1246 = vshrl.u32 %v1245, 7
      %v1247 = vsub.s32 0, %v1246
      %v1248 = vrot.slane %v1226, %v1247
      %v1249 = vlaneseq
      %v1250 = vshrl.u32 %v1249, 7
      %v1251 = vsub.s32 1, %v1250
      %v1252 = vrot.slane %v1226, %v1251
      %1258 = vrot.lane.b32.xlu0 %v1241, 123
      %v1259 = vpop.permute.xlu0 %1258
      %1260 = vrot.lane.b32.xlu0 %v1242, 123
      %v1261 = vpop.permute.xlu0 %1260
      %1262 = vrot.lane.b32.xlu0 %v1243, 123
      %v1263 = vpop.permute.xlu0 %1262
      %vm1264 = vcmask 1006592
      %v1265 = vsel %vm1264, %v1259, %v1261
      %v1266 = vsel %vm1264, %v1261, %v1263
      %v1269 = vmul.f32 %v1248, %v1265
      %v1270 = vmul.f32 %v1252, %v1266
      %v1271 = vadd.f32 %v1103, %v1269
      %v1272 = vadd.f32 %v1104, %v1270
      %s1273 = sld [smem:[#allocation5 + $0x6]]
      %v1274 = vstv %s1273
      %v1275 = vmul.f32 %v1274, %v285
      %v1276 = vmul.f32 %v1274, %v281
      %v1277 = vmul.f32 %v1274, %v286
      %s1278 = sld [smem:[#allocation5 + $0xd]]
      %v1279 = vstv %s1278
      %v1280 = vmul.f32 %v1279, %v285
      %v1281 = vmul.f32 %v1279, %v281
      %v1282 = vmul.f32 %v1279, %v286
      %s1283 = sld [smem:[#allocation5 + $0x14]]
      %v1284 = vstv %s1283
      %v1285 = vmul.f32 %v1284, %v285
      %v1286 = vmul.f32 %v1284, %v281
      %v1287 = vmul.f32 %v1284, %v286
      %1291 = vrot.lane.b32.xlu0 %v1285, 96
      %v1292 = vpop.permute.xlu0 %1291
      %1293 = vrot.lane.b32.xlu0 %v1286, 96
      %v1294 = vpop.permute.xlu0 %1293
      %1295 = vrot.lane.b32.xlu0 %v1287, 96
      %v1296 = vpop.permute.xlu0 %1295
      %v1297 = vsel %vm310, %v1292, %v1294
      %v1298 = vsel %vm310, %v1294, %v1296
      %v1302 = vadd.f32 %v1275, %v1297
      %v1303 = vadd.f32 %v1276, %v1298
      %v1304 = vadd.f32 %v1277, %v1296
      %s1305 = sld [smem:[#allocation5 + $0x1b]]
      %v1306 = vstv %s1305
      %v1307 = vmul.f32 %v1306, %v285
      %v1308 = vmul.f32 %v1306, %v281
      %v1309 = vmul.f32 %v1306, %v286
      %1313 = vrot.lane.b32.xlu0 %v1307, 96
      %v1314 = vpop.permute.xlu0 %1313
      %1315 = vrot.lane.b32.xlu0 %v1308, 96
      %v1316 = vpop.permute.xlu0 %1315
      %1317 = vrot.lane.b32.xlu0 %v1309, 96
      %v1318 = vpop.permute.xlu0 %1317
      %v1319 = vsel %vm310, %v1314, %v1316
      %v1320 = vsel %vm310, %v1316, %v1318
      %v1324 = vadd.f32 %v1280, %v1319
      %v1325 = vadd.f32 %v1281, %v1320
      %v1326 = vadd.f32 %v1282, %v1318
      %s1327 = sld [smem:[#allocation5 + $0x22]]
      %v1328 = vstv %s1327
      %v1329 = vmul.f32 %v1328, %v285
      %v1330 = vmul.f32 %v1328, %v281
      %v1331 = vmul.f32 %v1328, %v286
      %1335 = vrot.lane.b32.xlu0 %v1329, 64
      %v1336 = vpop.permute.xlu0 %1335
      %1337 = vrot.lane.b32.xlu0 %v1330, 64
      %v1338 = vpop.permute.xlu0 %1337
      %1339 = vrot.lane.b32.xlu0 %v1331, 64
      %v1340 = vpop.permute.xlu0 %1339
      %v1341 = vsel %vm353, %v1336, %v1338
      %v1342 = vsel %vm353, %v1338, %v1340
      %v1346 = vadd.f32 %v1302, %v1341
      %v1347 = vadd.f32 %v1303, %v1342
      %v1348 = vadd.f32 %v1304, %v1340
      %s1349 = sld [smem:[#allocation5 + $0x29]]
      %v1350 = vstv %s1349
      %v1351 = vmul.f32 %v1350, %v285
      %v1352 = vmul.f32 %v1350, %v281
      %v1353 = vmul.f32 %v1350, %v286
      %1357 = vrot.lane.b32.xlu0 %v1351, 64
      %v1358 = vpop.permute.xlu0 %1357
      %1359 = vrot.lane.b32.xlu0 %v1352, 64
      %v1360 = vpop.permute.xlu0 %1359
      %1361 = vrot.lane.b32.xlu0 %v1353, 64
      %v1362 = vpop.permute.xlu0 %1361
      %v1363 = vsel %vm353, %v1358, %v1360
      %v1364 = vsel %vm353, %v1360, %v1362
      %v1368 = vadd.f32 %v1324, %v1363
      %v1369 = vadd.f32 %v1325, %v1364
      %v1370 = vadd.f32 %v1326, %v1362
      %s1371 = sld [smem:[#allocation5 + $0x30]]
      %v1372 = vstv %s1371
      %v1373 = vmul.f32 %v1372, %v285
      %v1374 = vmul.f32 %v1372, %v281
      %v1375 = vmul.f32 %v1372, %v286
      %1379 = vrot.lane.b32.xlu0 %v1373, 32
      %v1380 = vpop.permute.xlu0 %1379
      %1381 = vrot.lane.b32.xlu0 %v1374, 32
      %v1382 = vpop.permute.xlu0 %1381
      %1383 = vrot.lane.b32.xlu0 %v1375, 32
      %v1384 = vpop.permute.xlu0 %1383
      %v1385 = vsel %vm396, %v1380, %v1382
      %v1386 = vsel %vm396, %v1382, %v1384
      %v1390 = vadd.f32 %v1346, %v1385
      %v1391 = vadd.f32 %v1347, %v1386
      %v1392 = vadd.f32 %v1348, %v1384
      %s1393 = scalar_lea.vmem [#allocation9], 6
      %v1394 = vld [vmem:[%s1393] ss:$8 sm:$0x3]
      %1398 = vrot.lane.b32.xlu0 %v1368, 112
      %v1399 = vpop.permute.xlu0 %1398
      %1400 = vrot.lane.b32.xlu0 %v1369, 112
      %v1401 = vpop.permute.xlu0 %1400
      %1402 = vrot.lane.b32.xlu0 %v1370, 112
      %v1403 = vpop.permute.xlu0 %1402
      %v1404 = vsel %vm413, %v1399, %v1401
      %v1405 = vsel %vm413, %v1401, %v1403
      %v1409 = vadd.f32 %v1390, %v1404
      %v1410 = vadd.f32 %v1391, %v1405
      %v1411 = vadd.f32 %v1392, %v1403
      %v1413 = vlaneseq
      %v1414 = vshrl.u32 %v1413, 7
      %v1415 = vsub.s32 0, %v1414
      %v1416 = vrot.slane %v1394, %v1415
      %v1417 = vlaneseq
      %v1418 = vshrl.u32 %v1417, 7
      %v1419 = vsub.s32 1, %v1418
      %v1420 = vrot.slane %v1394, %v1419
      %1426 = vrot.lane.b32.xlu0 %v1409, 122
      %v1427 = vpop.permute.xlu0 %1426
      %1428 = vrot.lane.b32.xlu0 %v1410, 122
      %v1429 = vpop.permute.xlu0 %1428
      %1430 = vrot.lane.b32.xlu0 %v1411, 122
      %v1431 = vpop.permute.xlu0 %1430
      %vm1432 = vcmask 998400
      %v1433 = vsel %vm1432, %v1427, %v1429
      %v1434 = vsel %vm1432, %v1429, %v1431
      %v1437 = vmul.f32 %v1416, %v1433
      %v1438 = vmul.f32 %v1420, %v1434
      %v1439 = vadd.f32 %v1271, %v1437
      %v1440 = vadd.f32 %v1272, %v1438
      %v1441 = vld [vmem:[#allocation3] sm:$0xf]
      %v1444 = vunpack.c.l.s4 1983009808
      %v1445 = vunpack.c.0.s8 %v1444
      %v1446 = vlaneseq
      %v1447 = vshrl.u32 %v1446, 7
      %v1448 = vsub.s32 %v1445, %v1447
      %v1449 = vrot.slane %v1441, %v1448
      %v1450 = vcombine.high %v1449, %v1449
      %1451 = vrot.lane.b32.xlu0 %v1449, 51
      %v1452 = vpop.permute.xlu0 %1451
      %1453 = vrot.lane.b32.xlu0 %v1450, 51
      %v1454 = vpop.permute.xlu0 %1453
      %v1455 = vsel %vm280, %v1452, %v1454
      %v1459 = vsel %vm280, 0.0, %v1452
      %v1460 = vsel %vm280, %v1454, 0.0
      %s1461 = sld [smem:[#allocation5 + $0x31]]
      %v1462 = vstv %s1461
      %v1463 = vmul.f32 %v1462, %v1459
      %v1464 = vmul.f32 %v1462, %v1455
      %s1465 = sld [smem:[#allocation5 + $0x38]]
      %v1466 = vstv %s1465
      %v1467 = vmul.f32 %v1466, %v1459
      %v1468 = vmul.f32 %v1466, %v1455
      %v1469 = vmul.f32 %v1466, %v1460
      %s1470 = sld [smem:[#allocation5 + $0x3f]]
      %v1471 = vstv %s1470
      %v1472 = vmul.f32 %v1471, %v1459
      %v1473 = vmul.f32 %v1471, %v1455
      %v1474 = vmul.f32 %v1471, %v1460
      %1478 = vrot.lane.b32.xlu0 %v1472, 96
      %v1479 = vpop.permute.xlu0 %1478
      %1480 = vrot.lane.b32.xlu0 %v1473, 96
      %v1481 = vpop.permute.xlu0 %1480
      %1482 = vrot.lane.b32.xlu0 %v1474, 96
      %v1483 = vpop.permute.xlu0 %1482
      %v1484 = vsel %vm310, %v1479, %v1481
      %v1485 = vsel %vm310, %v1481, %v1483
      %v1488 = vadd.f32 %v1463, %v1484
      %v1489 = vadd.f32 %v1464, %v1485
      %s1490 = sld [smem:[#allocation5 + $0x46]]
      %v1491 = vstv %s1490
      %v1492 = vmul.f32 %v1491, %v1459
      %v1493 = vmul.f32 %v1491, %v1455
      %v1494 = vmul.f32 %v1491, %v1460
      %1498 = vrot.lane.b32.xlu0 %v1492, 96
      %v1499 = vpop.permute.xlu0 %1498
      %1500 = vrot.lane.b32.xlu0 %v1493, 96
      %v1501 = vpop.permute.xlu0 %1500
      %1502 = vrot.lane.b32.xlu0 %v1494, 96
      %v1503 = vpop.permute.xlu0 %1502
      %v1504 = vsel %vm310, %v1499, %v1501
      %v1505 = vsel %vm310, %v1501, %v1503
      %v1509 = vadd.f32 %v1467, %v1504
      %v1510 = vadd.f32 %v1468, %v1505
      %v1511 = vadd.f32 %v1469, %v1503
      %s1512 = sld [smem:[#allocation5 + $0x4d]]
      %v1513 = vstv %s1512
      %v1514 = vmul.f32 %v1513, %v1459
      %v1515 = vmul.f32 %v1513, %v1455
      %v1516 = vmul.f32 %v1513, %v1460
      %1520 = vrot.lane.b32.xlu0 %v1514, 64
      %v1521 = vpop.permute.xlu0 %1520
      %1522 = vrot.lane.b32.xlu0 %v1515, 64
      %v1523 = vpop.permute.xlu0 %1522
      %1524 = vrot.lane.b32.xlu0 %v1516, 64
      %v1525 = vpop.permute.xlu0 %1524
      %v1526 = vsel %vm353, %v1521, %v1523
      %v1527 = vsel %vm353, %v1523, %v1525
      %v1530 = vadd.f32 %v1488, %v1526
      %v1531 = vadd.f32 %v1489, %v1527
      %s1532 = sld [smem:[#allocation5 + $0x54]]
      %v1533 = vstv %s1532
      %v1534 = vmul.f32 %v1533, %v1459
      %v1535 = vmul.f32 %v1533, %v1455
      %v1536 = vmul.f32 %v1533, %v1460
      %1540 = vrot.lane.b32.xlu0 %v1534, 64
      %v1541 = vpop.permute.xlu0 %1540
      %1542 = vrot.lane.b32.xlu0 %v1535, 64
      %v1543 = vpop.permute.xlu0 %1542
      %1544 = vrot.lane.b32.xlu0 %v1536, 64
      %v1545 = vpop.permute.xlu0 %1544
      %v1546 = vsel %vm353, %v1541, %v1543
      %v1547 = vsel %vm353, %v1543, %v1545
      %v1551 = vadd.f32 %v1509, %v1546
      %v1552 = vadd.f32 %v1510, %v1547
      %v1553 = vadd.f32 %v1511, %v1545
      %s1554 = sld [smem:[#allocation5 + $0x5b]]
      %v1555 = vstv %s1554
      %v1556 = vmul.f32 %v1555, %v1459
      %v1557 = vmul.f32 %v1555, %v1455
      %v1558 = vmul.f32 %v1555, %v1460
      %1562 = vrot.lane.b32.xlu0 %v1556, 32
      %v1563 = vpop.permute.xlu0 %1562
      %1564 = vrot.lane.b32.xlu0 %v1557, 32
      %v1565 = vpop.permute.xlu0 %1564
      %1566 = vrot.lane.b32.xlu0 %v1558, 32
      %v1567 = vpop.permute.xlu0 %1566
      %v1568 = vsel %vm396, %v1563, %v1565
      %v1569 = vsel %vm396, %v1565, %v1567
      %v1572 = vadd.f32 %v1530, %v1568
      %v1573 = vadd.f32 %v1531, %v1569
      %1577 = vrot.lane.b32.xlu0 %v1551, 112
      %v1578 = vpop.permute.xlu0 %1577
      %1579 = vrot.lane.b32.xlu0 %v1552, 112
      %v1580 = vpop.permute.xlu0 %1579
      %1581 = vrot.lane.b32.xlu0 %v1553, 112
      %v1582 = vpop.permute.xlu0 %1581
      %v1583 = vsel %vm413, %v1578, %v1580
      %v1584 = vsel %vm413, %v1580, %v1582
      %v1587 = vadd.f32 %v1572, %v1583
      %v1588 = vadd.f32 %v1573, %v1584
      %v1589 = vmul.f32 %v424, %v1587
      %v1590 = vmul.f32 %v428, %v1588
      %s1591 = sld [smem:[#allocation5 + $0x32]]
      %v1592 = vstv %s1591
      %v1593 = vmul.f32 %v1592, %v1459
      %v1594 = vmul.f32 %v1592, %v1455
      %v1595 = vmul.f32 %v1592, %v1460
      %s1596 = sld [smem:[#allocation5 + $0x39]]
      %v1597 = vstv %s1596
      %v1598 = vmul.f32 %v1597, %v1459
      %v1599 = vmul.f32 %v1597, %v1455
      %v1600 = vmul.f32 %v1597, %v1460
      %s1601 = sld [smem:[#allocation5 + $0x40]]
      %v1602 = vstv %s1601
      %v1603 = vmul.f32 %v1602, %v1459
      %v1604 = vmul.f32 %v1602, %v1455
      %v1605 = vmul.f32 %v1602, %v1460
      %1609 = vrot.lane.b32.xlu0 %v1603, 96
      %v1610 = vpop.permute.xlu0 %1609
      %1611 = vrot.lane.b32.xlu0 %v1604, 96
      %v1612 = vpop.permute.xlu0 %1611
      %1613 = vrot.lane.b32.xlu0 %v1605, 96
      %v1614 = vpop.permute.xlu0 %1613
      %v1615 = vsel %vm310, %v1610, %v1612
      %v1616 = vsel %vm310, %v1612, %v1614
      %v1620 = vadd.f32 %v1593, %v1615
      %v1621 = vadd.f32 %v1594, %v1616
      %v1622 = vadd.f32 %v1595, %v1614
      %s1623 = sld [smem:[#allocation5 + $0x47]]
      %v1624 = vstv %s1623
      %v1625 = vmul.f32 %v1624, %v1459
      %v1626 = vmul.f32 %v1624, %v1455
      %v1627 = vmul.f32 %v1624, %v1460
      %1631 = vrot.lane.b32.xlu0 %v1625, 96
      %v1632 = vpop.permute.xlu0 %1631
      %1633 = vrot.lane.b32.xlu0 %v1626, 96
      %v1634 = vpop.permute.xlu0 %1633
      %1635 = vrot.lane.b32.xlu0 %v1627, 96
      %v1636 = vpop.permute.xlu0 %1635
      %v1637 = vsel %vm310, %v1632, %v1634
      %v1638 = vsel %vm310, %v1634, %v1636
      %v1642 = vadd.f32 %v1598, %v1637
      %v1643 = vadd.f32 %v1599, %v1638
      %v1644 = vadd.f32 %v1600, %v1636
      %s1645 = sld [smem:[#allocation5 + $0x4e]]
      %v1646 = vstv %s1645
      %v1647 = vmul.f32 %v1646, %v1459
      %v1648 = vmul.f32 %v1646, %v1455
      %v1649 = vmul.f32 %v1646, %v1460
      %1653 = vrot.lane.b32.xlu0 %v1647, 64
      %v1654 = vpop.permute.xlu0 %1653
      %1655 = vrot.lane.b32.xlu0 %v1648, 64
      %v1656 = vpop.permute.xlu0 %1655
      %1657 = vrot.lane.b32.xlu0 %v1649, 64
      %v1658 = vpop.permute.xlu0 %1657
      %v1659 = vsel %vm353, %v1654, %v1656
      %v1660 = vsel %vm353, %v1656, %v1658
      %v1664 = vadd.f32 %v1620, %v1659
      %v1665 = vadd.f32 %v1621, %v1660
      %v1666 = vadd.f32 %v1622, %v1658
      %s1667 = sld [smem:[#allocation5 + $0x55]]
      %v1668 = vstv %s1667
      %v1669 = vmul.f32 %v1668, %v1459
      %v1670 = vmul.f32 %v1668, %v1455
      %v1671 = vmul.f32 %v1668, %v1460
      %1675 = vrot.lane.b32.xlu0 %v1669, 64
      %v1676 = vpop.permute.xlu0 %1675
      %1677 = vrot.lane.b32.xlu0 %v1670, 64
      %v1678 = vpop.permute.xlu0 %1677
      %1679 = vrot.lane.b32.xlu0 %v1671, 64
      %v1680 = vpop.permute.xlu0 %1679
      %v1681 = vsel %vm353, %v1676, %v1678
      %v1682 = vsel %vm353, %v1678, %v1680
      %v1686 = vadd.f32 %v1642, %v1681
      %v1687 = vadd.f32 %v1643, %v1682
      %v1688 = vadd.f32 %v1644, %v1680
      %s1689 = sld [smem:[#allocation5 + $0x5c]]
      %v1690 = vstv %s1689
      %v1691 = vmul.f32 %v1690, %v1459
      %v1692 = vmul.f32 %v1690, %v1455
      %v1693 = vmul.f32 %v1690, %v1460
      %1697 = vrot.lane.b32.xlu0 %v1691, 32
      %v1698 = vpop.permute.xlu0 %1697
      %1699 = vrot.lane.b32.xlu0 %v1692, 32
      %v1700 = vpop.permute.xlu0 %1699
      %1701 = vrot.lane.b32.xlu0 %v1693, 32
      %v1702 = vpop.permute.xlu0 %1701
      %v1703 = vsel %vm396, %v1698, %v1700
      %v1704 = vsel %vm396, %v1700, %v1702
      %v1708 = vadd.f32 %v1664, %v1703
      %v1709 = vadd.f32 %v1665, %v1704
      %v1710 = vadd.f32 %v1666, %v1702
      %1714 = vrot.lane.b32.xlu0 %v1686, 112
      %v1715 = vpop.permute.xlu0 %1714
      %1716 = vrot.lane.b32.xlu0 %v1687, 112
      %v1717 = vpop.permute.xlu0 %1716
      %1718 = vrot.lane.b32.xlu0 %v1688, 112
      %v1719 = vpop.permute.xlu0 %1718
      %v1720 = vsel %vm413, %v1715, %v1717
      %v1721 = vsel %vm413, %v1717, %v1719
      %v1725 = vadd.f32 %v1708, %v1720
      %v1726 = vadd.f32 %v1709, %v1721
      %v1727 = vadd.f32 %v1710, %v1719
      %1731 = vrot.lane.b32.xlu0 %v1725, 127
      %v1732 = vpop.permute.xlu0 %1731
      %1733 = vrot.lane.b32.xlu0 %v1726, 127
      %v1734 = vpop.permute.xlu0 %1733
      %1735 = vrot.lane.b32.xlu0 %v1727, 127
      %v1736 = vpop.permute.xlu0 %1735
      %v1737 = vsel %vm592, %v1732, %v1734
      %v1738 = vsel %vm592, %v1734, %v1736
      %v1741 = vmul.f32 %v576, %v1737
      %v1742 = vmul.f32 %v580, %v1738
      %v1743 = vadd.f32 %v1589, %v1741
      %v1744 = vadd.f32 %v1590, %v1742
      %s1745 = sld [smem:[#allocation5 + $0x33]]
      %v1746 = vstv %s1745
      %v1747 = vmul.f32 %v1746, %v1459
      %v1748 = vmul.f32 %v1746, %v1455
      %v1749 = vmul.f32 %v1746, %v1460
      %s1750 = sld [smem:[#allocation5 + $0x3a]]
      %v1751 = vstv %s1750
      %v1752 = vmul.f32 %v1751, %v1459
      %v1753 = vmul.f32 %v1751, %v1455
      %v1754 = vmul.f32 %v1751, %v1460
      %s1755 = sld [smem:[#allocation5 + $0x41]]
      %v1756 = vstv %s1755
      %v1757 = vmul.f32 %v1756, %v1459
      %v1758 = vmul.f32 %v1756, %v1455
      %v1759 = vmul.f32 %v1756, %v1460
      %1763 = vrot.lane.b32.xlu0 %v1757, 96
      %v1764 = vpop.permute.xlu0 %1763
      %1765 = vrot.lane.b32.xlu0 %v1758, 96
      %v1766 = vpop.permute.xlu0 %1765
      %1767 = vrot.lane.b32.xlu0 %v1759, 96
      %v1768 = vpop.permute.xlu0 %1767
      %v1769 = vsel %vm310, %v1764, %v1766
      %v1770 = vsel %vm310, %v1766, %v1768
      %v1774 = vadd.f32 %v1747, %v1769
      %v1775 = vadd.f32 %v1748, %v1770
      %v1776 = vadd.f32 %v1749, %v1768
      %s1777 = sld [smem:[#allocation5 + $0x48]]
      %v1778 = vstv %s1777
      %v1779 = vmul.f32 %v1778, %v1459
      %v1780 = vmul.f32 %v1778, %v1455
      %v1781 = vmul.f32 %v1778, %v1460
      %1785 = vrot.lane.b32.xlu0 %v1779, 96
      %v1786 = vpop.permute.xlu0 %1785
      %1787 = vrot.lane.b32.xlu0 %v1780, 96
      %v1788 = vpop.permute.xlu0 %1787
      %1789 = vrot.lane.b32.xlu0 %v1781, 96
      %v1790 = vpop.permute.xlu0 %1789
      %v1791 = vsel %vm310, %v1786, %v1788
      %v1792 = vsel %vm310, %v1788, %v1790
      %v1796 = vadd.f32 %v1752, %v1791
      %v1797 = vadd.f32 %v1753, %v1792
      %v1798 = vadd.f32 %v1754, %v1790
      %s1799 = sld [smem:[#allocation5 + $0x4f]]
      %v1800 = vstv %s1799
      %v1801 = vmul.f32 %v1800, %v1459
      %v1802 = vmul.f32 %v1800, %v1455
      %v1803 = vmul.f32 %v1800, %v1460
      %1807 = vrot.lane.b32.xlu0 %v1801, 64
      %v1808 = vpop.permute.xlu0 %1807
      %1809 = vrot.lane.b32.xlu0 %v1802, 64
      %v1810 = vpop.permute.xlu0 %1809
      %1811 = vrot.lane.b32.xlu0 %v1803, 64
      %v1812 = vpop.permute.xlu0 %1811
      %v1813 = vsel %vm353, %v1808, %v1810
      %v1814 = vsel %vm353, %v1810, %v1812
      %v1818 = vadd.f32 %v1774, %v1813
      %v1819 = vadd.f32 %v1775, %v1814
      %v1820 = vadd.f32 %v1776, %v1812
      %s1821 = sld [smem:[#allocation5 + $0x56]]
      %v1822 = vstv %s1821
      %v1823 = vmul.f32 %v1822, %v1459
      %v1824 = vmul.f32 %v1822, %v1455
      %v1825 = vmul.f32 %v1822, %v1460
      %1829 = vrot.lane.b32.xlu0 %v1823, 64
      %v1830 = vpop.permute.xlu0 %1829
      %1831 = vrot.lane.b32.xlu0 %v1824, 64
      %v1832 = vpop.permute.xlu0 %1831
      %1833 = vrot.lane.b32.xlu0 %v1825, 64
      %v1834 = vpop.permute.xlu0 %1833
      %v1835 = vsel %vm353, %v1830, %v1832
      %v1836 = vsel %vm353, %v1832, %v1834
      %v1840 = vadd.f32 %v1796, %v1835
      %v1841 = vadd.f32 %v1797, %v1836
      %v1842 = vadd.f32 %v1798, %v1834
      %s1843 = sld [smem:[#allocation5 + $0x5d]]
      %v1844 = vstv %s1843
      %v1845 = vmul.f32 %v1844, %v1459
      %v1846 = vmul.f32 %v1844, %v1455
      %v1847 = vmul.f32 %v1844, %v1460
      %1851 = vrot.lane.b32.xlu0 %v1845, 32
      %v1852 = vpop.permute.xlu0 %1851
      %1853 = vrot.lane.b32.xlu0 %v1846, 32
      %v1854 = vpop.permute.xlu0 %1853
      %1855 = vrot.lane.b32.xlu0 %v1847, 32
      %v1856 = vpop.permute.xlu0 %1855
      %v1857 = vsel %vm396, %v1852, %v1854
      %v1858 = vsel %vm396, %v1854, %v1856
      %v1862 = vadd.f32 %v1818, %v1857
      %v1863 = vadd.f32 %v1819, %v1858
      %v1864 = vadd.f32 %v1820, %v1856
      %1868 = vrot.lane.b32.xlu0 %v1840, 112
      %v1869 = vpop.permute.xlu0 %1868
      %1870 = vrot.lane.b32.xlu0 %v1841, 112
      %v1871 = vpop.permute.xlu0 %1870
      %1872 = vrot.lane.b32.xlu0 %v1842, 112
      %v1873 = vpop.permute.xlu0 %1872
      %v1874 = vsel %vm413, %v1869, %v1871
      %v1875 = vsel %vm413, %v1871, %v1873
      %v1879 = vadd.f32 %v1862, %v1874
      %v1880 = vadd.f32 %v1863, %v1875
      %v1881 = vadd.f32 %v1864, %v1873
      %1885 = vrot.lane.b32.xlu0 %v1879, 126
      %v1886 = vpop.permute.xlu0 %1885
      %1887 = vrot.lane.b32.xlu0 %v1880, 126
      %v1888 = vpop.permute.xlu0 %1887
      %1889 = vrot.lane.b32.xlu0 %v1881, 126
      %v1890 = vpop.permute.xlu0 %1889
      %v1891 = vsel %vm760, %v1886, %v1888
      %v1892 = vsel %vm760, %v1888, %v1890
      %v1895 = vmul.f32 %v744, %v1891
      %v1896 = vmul.f32 %v748, %v1892
      %v1897 = vadd.f32 %v1743, %v1895
      %v1898 = vadd.f32 %v1744, %v1896
      %s1899 = sld [smem:[#allocation5 + $0x34]]
      %v1900 = vstv %s1899
      %v1901 = vmul.f32 %v1900, %v1459
      %v1902 = vmul.f32 %v1900, %v1455
      %v1903 = vmul.f32 %v1900, %v1460
      %s1904 = sld [smem:[#allocation5 + $0x3b]]
      %v1905 = vstv %s1904
      %v1906 = vmul.f32 %v1905, %v1459
      %v1907 = vmul.f32 %v1905, %v1455
      %v1908 = vmul.f32 %v1905, %v1460
      %s1909 = sld [smem:[#allocation5 + $0x42]]
      %v1910 = vstv %s1909
      %v1911 = vmul.f32 %v1910, %v1459
      %v1912 = vmul.f32 %v1910, %v1455
      %v1913 = vmul.f32 %v1910, %v1460
      %1917 = vrot.lane.b32.xlu0 %v1911, 96
      %v1918 = vpop.permute.xlu0 %1917
      %1919 = vrot.lane.b32.xlu0 %v1912, 96
      %v1920 = vpop.permute.xlu0 %1919
      %1921 = vrot.lane.b32.xlu0 %v1913, 96
      %v1922 = vpop.permute.xlu0 %1921
      %v1923 = vsel %vm310, %v1918, %v1920
      %v1924 = vsel %vm310, %v1920, %v1922
      %v1928 = vadd.f32 %v1901, %v1923
      %v1929 = vadd.f32 %v1902, %v1924
      %v1930 = vadd.f32 %v1903, %v1922
      %s1931 = sld [smem:[#allocation5 + $0x49]]
      %v1932 = vstv %s1931
      %v1933 = vmul.f32 %v1932, %v1459
      %v1934 = vmul.f32 %v1932, %v1455
      %v1935 = vmul.f32 %v1932, %v1460
      %1939 = vrot.lane.b32.xlu0 %v1933, 96
      %v1940 = vpop.permute.xlu0 %1939
      %1941 = vrot.lane.b32.xlu0 %v1934, 96
      %v1942 = vpop.permute.xlu0 %1941
      %1943 = vrot.lane.b32.xlu0 %v1935, 96
      %v1944 = vpop.permute.xlu0 %1943
      %v1945 = vsel %vm310, %v1940, %v1942
      %v1946 = vsel %vm310, %v1942, %v1944
      %v1950 = vadd.f32 %v1906, %v1945
      %v1951 = vadd.f32 %v1907, %v1946
      %v1952 = vadd.f32 %v1908, %v1944
      %s1953 = sld [smem:[#allocation5 + $0x50]]
      %v1954 = vstv %s1953
      %v1955 = vmul.f32 %v1954, %v1459
      %v1956 = vmul.f32 %v1954, %v1455
      %v1957 = vmul.f32 %v1954, %v1460
      %1961 = vrot.lane.b32.xlu0 %v1955, 64
      %v1962 = vpop.permute.xlu0 %1961
      %1963 = vrot.lane.b32.xlu0 %v1956, 64
      %v1964 = vpop.permute.xlu0 %1963
      %1965 = vrot.lane.b32.xlu0 %v1957, 64
      %v1966 = vpop.permute.xlu0 %1965
      %v1967 = vsel %vm353, %v1962, %v1964
      %v1968 = vsel %vm353, %v1964, %v1966
      %v1972 = vadd.f32 %v1928, %v1967
      %v1973 = vadd.f32 %v1929, %v1968
      %v1974 = vadd.f32 %v1930, %v1966
      %s1975 = sld [smem:[#allocation5 + $0x57]]
      %v1976 = vstv %s1975
      %v1977 = vmul.f32 %v1976, %v1459
      %v1978 = vmul.f32 %v1976, %v1455
      %v1979 = vmul.f32 %v1976, %v1460
      %1983 = vrot.lane.b32.xlu0 %v1977, 64
      %v1984 = vpop.permute.xlu0 %1983
      %1985 = vrot.lane.b32.xlu0 %v1978, 64
      %v1986 = vpop.permute.xlu0 %1985
      %1987 = vrot.lane.b32.xlu0 %v1979, 64
      %v1988 = vpop.permute.xlu0 %1987
      %v1989 = vsel %vm353, %v1984, %v1986
      %v1990 = vsel %vm353, %v1986, %v1988
      %v1994 = vadd.f32 %v1950, %v1989
      %v1995 = vadd.f32 %v1951, %v1990
      %v1996 = vadd.f32 %v1952, %v1988
      %s1997 = sld [smem:[#allocation5 + $0x5e]]
      %v1998 = vstv %s1997
      %v1999 = vmul.f32 %v1998, %v1459
      %v2000 = vmul.f32 %v1998, %v1455
      %v2001 = vmul.f32 %v1998, %v1460
      %2005 = vrot.lane.b32.xlu0 %v1999, 32
      %v2006 = vpop.permute.xlu0 %2005
      %2007 = vrot.lane.b32.xlu0 %v2000, 32
      %v2008 = vpop.permute.xlu0 %2007
      %2009 = vrot.lane.b32.xlu0 %v2001, 32
      %v2010 = vpop.permute.xlu0 %2009
      %v2011 = vsel %vm396, %v2006, %v2008
      %v2012 = vsel %vm396, %v2008, %v2010
      %v2016 = vadd.f32 %v1972, %v2011
      %v2017 = vadd.f32 %v1973, %v2012
      %v2018 = vadd.f32 %v1974, %v2010
      %2022 = vrot.lane.b32.xlu0 %v1994, 112
      %v2023 = vpop.permute.xlu0 %2022
      %2024 = vrot.lane.b32.xlu0 %v1995, 112
      %v2025 = vpop.permute.xlu0 %2024
      %2026 = vrot.lane.b32.xlu0 %v1996, 112
      %v2027 = vpop.permute.xlu0 %2026
      %v2028 = vsel %vm413, %v2023, %v2025
      %v2029 = vsel %vm413, %v2025, %v2027
      %v2033 = vadd.f32 %v2016, %v2028
      %v2034 = vadd.f32 %v2017, %v2029
      %v2035 = vadd.f32 %v2018, %v2027
      %2039 = vrot.lane.b32.xlu0 %v2033, 125
      %v2040 = vpop.permute.xlu0 %2039
      %2041 = vrot.lane.b32.xlu0 %v2034, 125
      %v2042 = vpop.permute.xlu0 %2041
      %2043 = vrot.lane.b32.xlu0 %v2035, 125
      %v2044 = vpop.permute.xlu0 %2043
      %v2045 = vsel %vm928, %v2040, %v2042
      %v2046 = vsel %vm928, %v2042, %v2044
      %v2049 = vmul.f32 %v912, %v2045
      %v2050 = vmul.f32 %v916, %v2046
      %v2051 = vadd.f32 %v1897, %v2049
      %v2052 = vadd.f32 %v1898, %v2050
      %s2053 = sld [smem:[#allocation5 + $0x35]]
      %v2054 = vstv %s2053
      %v2055 = vmul.f32 %v2054, %v1459
      %v2056 = vmul.f32 %v2054, %v1455
      %v2057 = vmul.f32 %v2054, %v1460
      %s2058 = sld [smem:[#allocation5 + $0x3c]]
      %v2059 = vstv %s2058
      %v2060 = vmul.f32 %v2059, %v1459
      %v2061 = vmul.f32 %v2059, %v1455
      %v2062 = vmul.f32 %v2059, %v1460
      %s2063 = sld [smem:[#allocation5 + $0x43]]
      %v2064 = vstv %s2063
      %v2065 = vmul.f32 %v2064, %v1459
      %v2066 = vmul.f32 %v2064, %v1455
      %v2067 = vmul.f32 %v2064, %v1460
      %2071 = vrot.lane.b32.xlu0 %v2065, 96
      %v2072 = vpop.permute.xlu0 %2071
      %2073 = vrot.lane.b32.xlu0 %v2066, 96
      %v2074 = vpop.permute.xlu0 %2073
      %2075 = vrot.lane.b32.xlu0 %v2067, 96
      %v2076 = vpop.permute.xlu0 %2075
      %v2077 = vsel %vm310, %v2072, %v2074
      %v2078 = vsel %vm310, %v2074, %v2076
      %v2082 = vadd.f32 %v2055, %v2077
      %v2083 = vadd.f32 %v2056, %v2078
      %v2084 = vadd.f32 %v2057, %v2076
      %s2085 = sld [smem:[#allocation5 + $0x4a]]
      %v2086 = vstv %s2085
      %v2087 = vmul.f32 %v2086, %v1459
      %v2088 = vmul.f32 %v2086, %v1455
      %v2089 = vmul.f32 %v2086, %v1460
      %2093 = vrot.lane.b32.xlu0 %v2087, 96
      %v2094 = vpop.permute.xlu0 %2093
      %2095 = vrot.lane.b32.xlu0 %v2088, 96
      %v2096 = vpop.permute.xlu0 %2095
      %2097 = vrot.lane.b32.xlu0 %v2089, 96
      %v2098 = vpop.permute.xlu0 %2097
      %v2099 = vsel %vm310, %v2094, %v2096
      %v2100 = vsel %vm310, %v2096, %v2098
      %v2104 = vadd.f32 %v2060, %v2099
      %v2105 = vadd.f32 %v2061, %v2100
      %v2106 = vadd.f32 %v2062, %v2098
      %s2107 = sld [smem:[#allocation5 + $0x51]]
      %v2108 = vstv %s2107
      %v2109 = vmul.f32 %v2108, %v1459
      %v2110 = vmul.f32 %v2108, %v1455
      %v2111 = vmul.f32 %v2108, %v1460
      %2115 = vrot.lane.b32.xlu0 %v2109, 64
      %v2116 = vpop.permute.xlu0 %2115
      %2117 = vrot.lane.b32.xlu0 %v2110, 64
      %v2118 = vpop.permute.xlu0 %2117
      %2119 = vrot.lane.b32.xlu0 %v2111, 64
      %v2120 = vpop.permute.xlu0 %2119
      %v2121 = vsel %vm353, %v2116, %v2118
      %v2122 = vsel %vm353, %v2118, %v2120
      %v2126 = vadd.f32 %v2082, %v2121
      %v2127 = vadd.f32 %v2083, %v2122
      %v2128 = vadd.f32 %v2084, %v2120
      %s2129 = sld [smem:[#allocation5 + $0x58]]
      %v2130 = vstv %s2129
      %v2131 = vmul.f32 %v2130, %v1459
      %v2132 = vmul.f32 %v2130, %v1455
      %v2133 = vmul.f32 %v2130, %v1460
      %2137 = vrot.lane.b32.xlu0 %v2131, 64
      %v2138 = vpop.permute.xlu0 %2137
      %2139 = vrot.lane.b32.xlu0 %v2132, 64
      %v2140 = vpop.permute.xlu0 %2139
      %2141 = vrot.lane.b32.xlu0 %v2133, 64
      %v2142 = vpop.permute.xlu0 %2141
      %v2143 = vsel %vm353, %v2138, %v2140
      %v2144 = vsel %vm353, %v2140, %v2142
      %v2148 = vadd.f32 %v2104, %v2143
      %v2149 = vadd.f32 %v2105, %v2144
      %v2150 = vadd.f32 %v2106, %v2142
      %s2151 = sld [smem:[#allocation5 + $0x5f]]
      %v2152 = vstv %s2151
      %v2153 = vmul.f32 %v2152, %v1459
      %v2154 = vmul.f32 %v2152, %v1455
      %v2155 = vmul.f32 %v2152, %v1460
      %2159 = vrot.lane.b32.xlu0 %v2153, 32
      %v2160 = vpop.permute.xlu0 %2159
      %2161 = vrot.lane.b32.xlu0 %v2154, 32
      %v2162 = vpop.permute.xlu0 %2161
      %2163 = vrot.lane.b32.xlu0 %v2155, 32
      %v2164 = vpop.permute.xlu0 %2163
      %v2165 = vsel %vm396, %v2160, %v2162
      %v2166 = vsel %vm396, %v2162, %v2164
      %v2170 = vadd.f32 %v2126, %v2165
      %v2171 = vadd.f32 %v2127, %v2166
      %v2172 = vadd.f32 %v2128, %v2164
      %2176 = vrot.lane.b32.xlu0 %v2148, 112
      %v2177 = vpop.permute.xlu0 %2176
      %2178 = vrot.lane.b32.xlu0 %v2149, 112
      %v2179 = vpop.permute.xlu0 %2178
      %2180 = vrot.lane.b32.xlu0 %v2150, 112
      %v2181 = vpop.permute.xlu0 %2180
      %v2182 = vsel %vm413, %v2177, %v2179
      %v2183 = vsel %vm413, %v2179, %v2181
      %v2187 = vadd.f32 %v2170, %v2182
      %v2188 = vadd.f32 %v2171, %v2183
      %v2189 = vadd.f32 %v2172, %v2181
      %2193 = vrot.lane.b32.xlu0 %v2187, 124
      %v2194 = vpop.permute.xlu0 %2193
      %2195 = vrot.lane.b32.xlu0 %v2188, 124
      %v2196 = vpop.permute.xlu0 %2195
      %2197 = vrot.lane.b32.xlu0 %v2189, 124
      %v2198 = vpop.permute.xlu0 %2197
      %v2199 = vsel %vm1096, %v2194, %v2196
      %v2200 = vsel %vm1096, %v2196, %v2198
      %v2203 = vmul.f32 %v1080, %v2199
      %v2204 = vmul.f32 %v1084, %v2200
      %v2205 = vadd.f32 %v2051, %v2203
      %v2206 = vadd.f32 %v2052, %v2204
      %s2207 = sld [smem:[#allocation5 + $0x36]]
      %v2208 = vstv %s2207
      %v2209 = vmul.f32 %v2208, %v1459
      %v2210 = vmul.f32 %v2208, %v1455
      %v2211 = vmul.f32 %v2208, %v1460
      %s2212 = sld [smem:[#allocation5 + $0x3d]]
      %v2213 = vstv %s2212
      %v2214 = vmul.f32 %v2213, %v1459
      %v2215 = vmul.f32 %v2213, %v1455
      %v2216 = vmul.f32 %v2213, %v1460
      %s2217 = sld [smem:[#allocation5 + $0x44]]
      %v2218 = vstv %s2217
      %v2219 = vmul.f32 %v2218, %v1459
      %v2220 = vmul.f32 %v2218, %v1455
      %v2221 = vmul.f32 %v2218, %v1460
      %2225 = vrot.lane.b32.xlu0 %v2219, 96
      %v2226 = vpop.permute.xlu0 %2225
      %2227 = vrot.lane.b32.xlu0 %v2220, 96
      %v2228 = vpop.permute.xlu0 %2227
      %2229 = vrot.lane.b32.xlu0 %v2221, 96
      %v2230 = vpop.permute.xlu0 %2229
      %v2231 = vsel %vm310, %v2226, %v2228
      %v2232 = vsel %vm310, %v2228, %v2230
      %v2236 = vadd.f32 %v2209, %v2231
      %v2237 = vadd.f32 %v2210, %v2232
      %v2238 = vadd.f32 %v2211, %v2230
      %s2239 = sld [smem:[#allocation5 + $0x4b]]
      %v2240 = vstv %s2239
      %v2241 = vmul.f32 %v2240, %v1459
      %v2242 = vmul.f32 %v2240, %v1455
      %v2243 = vmul.f32 %v2240, %v1460
      %2247 = vrot.lane.b32.xlu0 %v2241, 96
      %v2248 = vpop.permute.xlu0 %2247
      %2249 = vrot.lane.b32.xlu0 %v2242, 96
      %v2250 = vpop.permute.xlu0 %2249
      %2251 = vrot.lane.b32.xlu0 %v2243, 96
      %v2252 = vpop.permute.xlu0 %2251
      %v2253 = vsel %vm310, %v2248, %v2250
      %v2254 = vsel %vm310, %v2250, %v2252
      %v2258 = vadd.f32 %v2214, %v2253
      %v2259 = vadd.f32 %v2215, %v2254
      %v2260 = vadd.f32 %v2216, %v2252
      %s2261 = sld [smem:[#allocation5 + $0x52]]
      %v2262 = vstv %s2261
      %v2263 = vmul.f32 %v2262, %v1459
      %v2264 = vmul.f32 %v2262, %v1455
      %v2265 = vmul.f32 %v2262, %v1460
      %2269 = vrot.lane.b32.xlu0 %v2263, 64
      %v2270 = vpop.permute.xlu0 %2269
      %2271 = vrot.lane.b32.xlu0 %v2264, 64
      %v2272 = vpop.permute.xlu0 %2271
      %2273 = vrot.lane.b32.xlu0 %v2265, 64
      %v2274 = vpop.permute.xlu0 %2273
      %v2275 = vsel %vm353, %v2270, %v2272
      %v2276 = vsel %vm353, %v2272, %v2274
      %v2280 = vadd.f32 %v2236, %v2275
      %v2281 = vadd.f32 %v2237, %v2276
      %v2282 = vadd.f32 %v2238, %v2274
      %s2283 = sld [smem:[#allocation5 + $0x59]]
      %v2284 = vstv %s2283
      %v2285 = vmul.f32 %v2284, %v1459
      %v2286 = vmul.f32 %v2284, %v1455
      %v2287 = vmul.f32 %v2284, %v1460
      %2291 = vrot.lane.b32.xlu0 %v2285, 64
      %v2292 = vpop.permute.xlu0 %2291
      %2293 = vrot.lane.b32.xlu0 %v2286, 64
      %v2294 = vpop.permute.xlu0 %2293
      %2295 = vrot.lane.b32.xlu0 %v2287, 64
      %v2296 = vpop.permute.xlu0 %2295
      %v2297 = vsel %vm353, %v2292, %v2294
      %v2298 = vsel %vm353, %v2294, %v2296
      %v2302 = vadd.f32 %v2258, %v2297
      %v2303 = vadd.f32 %v2259, %v2298
      %v2304 = vadd.f32 %v2260, %v2296
      %s2305 = sld [smem:[#allocation5 + $0x60]]
      %v2306 = vstv %s2305
      %v2307 = vmul.f32 %v2306, %v1459
      %v2308 = vmul.f32 %v2306, %v1455
      %v2309 = vmul.f32 %v2306, %v1460
      %2313 = vrot.lane.b32.xlu0 %v2307, 32
      %v2314 = vpop.permute.xlu0 %2313
      %2315 = vrot.lane.b32.xlu0 %v2308, 32
      %v2316 = vpop.permute.xlu0 %2315
      %2317 = vrot.lane.b32.xlu0 %v2309, 32
      %v2318 = vpop.permute.xlu0 %2317
      %v2319 = vsel %vm396, %v2314, %v2316
      %v2320 = vsel %vm396, %v2316, %v2318
      %v2324 = vadd.f32 %v2280, %v2319
      %v2325 = vadd.f32 %v2281, %v2320
      %v2326 = vadd.f32 %v2282, %v2318
      %2330 = vrot.lane.b32.xlu0 %v2302, 112
      %v2331 = vpop.permute.xlu0 %2330
      %2332 = vrot.lane.b32.xlu0 %v2303, 112
      %v2333 = vpop.permute.xlu0 %2332
      %2334 = vrot.lane.b32.xlu0 %v2304, 112
      %v2335 = vpop.permute.xlu0 %2334
      %v2336 = vsel %vm413, %v2331, %v2333
      %v2337 = vsel %vm413, %v2333, %v2335
      %v2341 = vadd.f32 %v2324, %v2336
      %v2342 = vadd.f32 %v2325, %v2337
      %v2343 = vadd.f32 %v2326, %v2335
      %2347 = vrot.lane.b32.xlu0 %v2341, 123
      %v2348 = vpop.permute.xlu0 %2347
      %2349 = vrot.lane.b32.xlu0 %v2342, 123
      %v2350 = vpop.permute.xlu0 %2349
      %2351 = vrot.lane.b32.xlu0 %v2343, 123
      %v2352 = vpop.permute.xlu0 %2351
      %v2353 = vsel %vm1264, %v2348, %v2350
      %v2354 = vsel %vm1264, %v2350, %v2352
      %v2357 = vmul.f32 %v1248, %v2353
      %v2358 = vmul.f32 %v1252, %v2354
      %v2359 = vadd.f32 %v2205, %v2357
      %v2360 = vadd.f32 %v2206, %v2358
      %s2361 = sld [smem:[#allocation5 + $0x37]]
      %v2362 = vstv %s2361
      %v2363 = vmul.f32 %v2362, %v1459
      %v2364 = vmul.f32 %v2362, %v1455
      %v2365 = vmul.f32 %v2362, %v1460
      %s2366 = sld [smem:[#allocation5 + $0x3e]]
      %v2367 = vstv %s2366
      %v2368 = vmul.f32 %v2367, %v1459
      %v2369 = vmul.f32 %v2367, %v1455
      %v2370 = vmul.f32 %v2367, %v1460
      %s2371 = sld [smem:[#allocation5 + $0x45]]
      %v2372 = vstv %s2371
      %v2373 = vmul.f32 %v2372, %v1459
      %v2374 = vmul.f32 %v2372, %v1455
      %v2375 = vmul.f32 %v2372, %v1460
      %2379 = vrot.lane.b32.xlu0 %v2373, 96
      %v2380 = vpop.permute.xlu0 %2379
      %2381 = vrot.lane.b32.xlu0 %v2374, 96
      %v2382 = vpop.permute.xlu0 %2381
      %2383 = vrot.lane.b32.xlu0 %v2375, 96
      %v2384 = vpop.permute.xlu0 %2383
      %v2385 = vsel %vm310, %v2380, %v2382
      %v2386 = vsel %vm310, %v2382, %v2384
      %v2390 = vadd.f32 %v2363, %v2385
      %v2391 = vadd.f32 %v2364, %v2386
      %v2392 = vadd.f32 %v2365, %v2384
      %s2393 = sld [smem:[#allocation5 + $0x4c]]
      %v2394 = vstv %s2393
      %v2395 = vmul.f32 %v2394, %v1459
      %v2396 = vmul.f32 %v2394, %v1455
      %v2397 = vmul.f32 %v2394, %v1460
      %2401 = vrot.lane.b32.xlu0 %v2395, 96
      %v2402 = vpop.permute.xlu0 %2401
      %2403 = vrot.lane.b32.xlu0 %v2396, 96
      %v2404 = vpop.permute.xlu0 %2403
      %2405 = vrot.lane.b32.xlu0 %v2397, 96
      %v2406 = vpop.permute.xlu0 %2405
      %v2407 = vsel %vm310, %v2402, %v2404
      %v2408 = vsel %vm310, %v2404, %v2406
      %v2412 = vadd.f32 %v2368, %v2407
      %v2413 = vadd.f32 %v2369, %v2408
      %v2414 = vadd.f32 %v2370, %v2406
      %s2415 = sld [smem:[#allocation5 + $0x53]]
      %v2416 = vstv %s2415
      %v2417 = vmul.f32 %v2416, %v1459
      %v2418 = vmul.f32 %v2416, %v1455
      %v2419 = vmul.f32 %v2416, %v1460
      %2423 = vrot.lane.b32.xlu0 %v2417, 64
      %v2424 = vpop.permute.xlu0 %2423
      %2425 = vrot.lane.b32.xlu0 %v2418, 64
      %v2426 = vpop.permute.xlu0 %2425
      %2427 = vrot.lane.b32.xlu0 %v2419, 64
      %v2428 = vpop.permute.xlu0 %2427
      %v2429 = vsel %vm353, %v2424, %v2426
      %v2430 = vsel %vm353, %v2426, %v2428
      %v2434 = vadd.f32 %v2390, %v2429
      %v2435 = vadd.f32 %v2391, %v2430
      %v2436 = vadd.f32 %v2392, %v2428
      %s2437 = sld [smem:[#allocation5 + $0x5a]]
      %v2438 = vstv %s2437
      %v2439 = vmul.f32 %v2438, %v1459
      %v2440 = vmul.f32 %v2438, %v1455
      %v2441 = vmul.f32 %v2438, %v1460
      %2445 = vrot.lane.b32.xlu0 %v2439, 64
      %v2446 = vpop.permute.xlu0 %2445
      %2447 = vrot.lane.b32.xlu0 %v2440, 64
      %v2448 = vpop.permute.xlu0 %2447
      %2449 = vrot.lane.b32.xlu0 %v2441, 64
      %v2450 = vpop.permute.xlu0 %2449
      %v2451 = vsel %vm353, %v2446, %v2448
      %v2452 = vsel %vm353, %v2448, %v2450
      %v2456 = vadd.f32 %v2412, %v2451
      %v2457 = vadd.f32 %v2413, %v2452
      %v2458 = vadd.f32 %v2414, %v2450
      %s2459 = sld [smem:[#allocation5 + $0x61]]
      %v2460 = vstv %s2459
      %v2461 = vmul.f32 %v2460, %v1459
      %v2462 = vmul.f32 %v2460, %v1455
      %v2463 = vmul.f32 %v2460, %v1460
      %2467 = vrot.lane.b32.xlu0 %v2461, 32
      %v2468 = vpop.permute.xlu0 %2467
      %2469 = vrot.lane.b32.xlu0 %v2462, 32
      %v2470 = vpop.permute.xlu0 %2469
      %2471 = vrot.lane.b32.xlu0 %v2463, 32
      %v2472 = vpop.permute.xlu0 %2471
      %v2473 = vsel %vm396, %v2468, %v2470
      %v2474 = vsel %vm396, %v2470, %v2472
      %v2478 = vadd.f32 %v2434, %v2473
      %v2479 = vadd.f32 %v2435, %v2474
      %v2480 = vadd.f32 %v2436, %v2472
      %2484 = vrot.lane.b32.xlu0 %v2456, 112
      %v2485 = vpop.permute.xlu0 %2484
      %2486 = vrot.lane.b32.xlu0 %v2457, 112
      %v2487 = vpop.permute.xlu0 %2486
      %2488 = vrot.lane.b32.xlu0 %v2458, 112
      %v2489 = vpop.permute.xlu0 %2488
      %v2490 = vsel %vm413, %v2485, %v2487
      %v2491 = vsel %vm413, %v2487, %v2489
      %v2495 = vadd.f32 %v2478, %v2490
      %v2496 = vadd.f32 %v2479, %v2491
      %v2497 = vadd.f32 %v2480, %v2489
      %2501 = vrot.lane.b32.xlu0 %v2495, 122
      %v2502 = vpop.permute.xlu0 %2501
      %2503 = vrot.lane.b32.xlu0 %v2496, 122
      %v2504 = vpop.permute.xlu0 %2503
      %2505 = vrot.lane.b32.xlu0 %v2497, 122
      %v2506 = vpop.permute.xlu0 %2505
      %v2507 = vsel %vm1432, %v2502, %v2504
      %v2508 = vsel %vm1432, %v2504, %v2506
      %v2511 = vmul.f32 %v1416, %v2507
      %v2512 = vmul.f32 %v1420, %v2508
      %v2513 = vadd.f32 %v2359, %v2511
      %v2514 = vadd.f32 %v2360, %v2512
      %v2515 = vadd.f32 %v1439, %v2513
      %v2516 = vadd.f32 %v1440, %v2514
      %s2517 = sld [smem:[#allocation4]]
      %v2518 = vstv %s2517
      %v2519 = vadd.f32 %v2515, %v2518
      %v2520 = vadd.f32 %v2516, %v2518
      %v2521 = vxor.u32 %v2519, 2147483648
      %v2522 = vxor.u32 %v2520, 2147483648
      %v2523 = vmul.f32 %v2521, 1.442695
      %v2524 = vpow.pop %v2523
      %v2525 = vmul.f32 %v2522, 1.442695
      %v2526 = vpow.pop %v2525
      %v2527 = vadd.f32 %v2524, 1.0
      %v2528 = vadd.f32 %v2526, 1.0
      %v2529 = vrcp.pop %v2527
      %v2530 = vmul.f32 1.0, %v2529
      %v2531 = vrcp.pop %v2528
      %v2532 = vmul.f32 1.0, %v2531
      %v2535 = vcombine.low %v2530, %v2532
      %v2537 = vunpack.c.l.s4 1983009808
      %v2538 = vunpack.c.0.s8 %v2537
      %v2539 = vlaneseq
      %v2540 = vshrl.u32 %v2539, 7
      %v2541 = vsub.s32 %v2538, %v2540
      %v2542 = vrot.slane %v2535, %v2541
      %2544 = vst [vmem:[#allocation12] sm:$0xf] %v2542
    $region41: #{tpu_custom_call.1} parent=1 // pred_fallthru
      _
    // Predicated region
    $region42: #{tpu_custom_call.1} parent=1 // pred_check
      _
    $region43: #{tpu_custom_call.1} parent=1 // pred_check_branch
      %2546 = sbr.rel (0) target = $region45
    $region44: #{tpu_custom_call.1} parent=1 // pred_region
      %s2548 = ssub.s32 64, 64
      %2549 = vsyncadd [#allocation7], %s2548
      %s2551 = sshll.u32 [#allocation12], 4
      %s2552 = int_to_ptr.vmem [resolvable:$true] %s2551
      %2554 = dma.vmem_to_hbm [thread:$0]  %s2552, 64, %s4, [#allocation7]
    $region45: #{tpu_custom_call.1} parent=1 // pred_fallthru
      _
    // Predicated region
    $region46: #{tpu_custom_call.1} parent=1 // pred_check
      _
    $region47: #{tpu_custom_call.1} parent=1 // pred_check_branch
      %2556 = sbr.rel (0) target = $region49
    $region48: #{tpu_custom_call.1} parent=1 // pred_region
      %2557 = dma.done [#allocation7], 64
    $region49: #{tpu_custom_call.1} parent=1 // pred_fallthru
      _
    %2558 = vsyncpa [#allocation6], 1
    %2559 = vsyncpa [#allocation11], 1
    %2560 = vsyncpa [#allocation7], 1
    %2561 = vsyncpa [#allocation8], 1

</llo_original>
